<compile_context>
chip_gen: v5e
topology: v5e:2x2
jax: 0.10.0
libtpu: 0.0.40
codegen_flags: <defaults>
</compile_context>

<pallas_src>
import jax
import jax.numpy as jnp
from jax import lax
from jax.experimental import pallas as pl
from jax.experimental.pallas import tpu as pltpu


def gru_fc_kernel(gi_ref, whh_ref, bhn_ref, wfc_ref, bfc_ref, out_ref, h_ref):
    """One time-chunk of the GRU recurrence (+ final Linear on the last chunk).

    gi_ref:  (Tc*Bp, 3*Hp) f32   precomputed x_t @ W_ih + folded biases [r|z|n]
    whh_ref: (Hp, 3*Hp)    bf16  hidden->hidden weights, gate blocks [r|z|n]
    bhn_ref: (1, Hp)       f32   b_hh_n (must stay inside r * (...))
    wfc_ref: (Hp, Op)      bf16  final linear weight (transposed)
    bfc_ref: (1, Op)       f32
    out_ref: (Bp, Op)      f32   logits (padded, lane-dense store)
    h_ref:   (Bp, Hp)      f32   persistent hidden-state carry (VMEM scratch)
    """
    Bp = out_ref.shape[0]
    Hp = whh_ref.shape[0]
    Tc = gi_ref.shape[0] // Bp
    c = pl.program_id(0)

    @pl.when(c == 0)
    def _():
        h_ref[...] = jnp.zeros_like(h_ref)

    bhn = bhn_ref[...]  # single vreg; cheap to keep live

    def step(t, h):
        start = pl.multiple_of(t * Bp, 8)          # sublane-aligned slice start
        gi = gi_ref[pl.ds(start, Bp), :]                                # (Bp,3Hp)
        # W_hh read from VMEM inside the step (not held in vregs across the
        # unrolled loop); bf16 MXU operands, f32 accumulation.
        gh = jnp.dot(h.astype(jnp.bfloat16), whh_ref[...],
                     preferred_element_type=jnp.float32)                # (Bp,3Hp)
        r = jax.nn.sigmoid(gi[:, 0:Hp] + gh[:, 0:Hp])
        z = jax.nn.sigmoid(gi[:, Hp:2 * Hp] + gh[:, Hp:2 * Hp])
        n = jnp.tanh(gi[:, 2 * Hp:3 * Hp] + r * (gh[:, 2 * Hp:3 * Hp] + bhn))
        return (1.0 - z) * n + z * h

    # Full unroll for short chunks; bounded lookahead otherwise so the
    # scheduler overlaps step t+1's MXU push with step t's EUP chain without
    # exploding vreg live ranges.
    unroll = True if Tc <= 16 else 4
    h_ref[...] = lax.fori_loop(0, Tc, step, h_ref[...], unroll=unroll)

    @pl.when(c == pl.num_programs(0) - 1)
    def _():
        out_ref[...] = (jnp.dot(h_ref[...].astype(jnp.bfloat16), wfc_ref[...],
                                preferred_element_type=jnp.float32)
                        + bfc_ref[...])


def _round_up(x, m):
    return ((x + m - 1) // m) * m


def _pad_to(x, axis, target):
    pad = target - x.shape[axis]
    if pad <= 0:
        return x
    widths = [(0, 0)] * x.ndim
    widths[axis] = (0, pad)
    return jnp.pad(x, widths)


def _pad_gates(w, hp, axis):
    """Split the concatenated [r|z|n] gate axis, zero-pad each block to hp, re-concat."""
    r, z, n = jnp.split(w, 3, axis=axis)
    return jnp.concatenate(
        [_pad_to(r, axis, hp), _pad_to(z, axis, hp), _pad_to(n, axis, hp)],
        axis=axis)


def _pick_time_chunk(t, max_chunk=128):
    """Largest divisor of t that is <= max_chunk (keeps gi blocks exact)."""
    for tc in range(min(t, max_chunk), 0, -1):
        if t % tc == 0:
            return tc
    return t


def rnn_classifier_forward(context_tensor, params):
    """context_tensor: (B, T) int32 token indices. Returns logits (B, O) f32."""
    emb_table = params["emb"]          # (V, E)
    w_ih_t = params["w_ih_t"]          # (E, 3H)   gates [r|z|n]
    w_hh_t = params["w_hh_t"]          # (H, 3H)
    b_ih = params["b_ih"]              # (1, 3H)
    b_hh = params["b_hh"]              # (1, 3H)
    w_fc_t = params["w_fc_t"]          # (H, O)
    b_fc = params["b_fc"]              # (1, O)

    B, T = context_tensor.shape
    H = w_hh_t.shape[0]
    O = w_fc_t.shape[1]

    Bp = _round_up(B, 8)       # sublane width
    Hp = _round_up(H, 128)     # lane width -> 128-aligned gate slices
    Op = _round_up(O, 128)     # lane-dense output store

    # --- Fuse embedding + input projection + bias folding into one small table.
    # b_ih (all gates) + b_hh for r/z fold into the projection; b_hh_n stays
    # separate so it remains inside r * (W_hn h + b_hn)  (exact PyTorch GRU).
    b_ih_r, b_ih_z, b_ih_n = jnp.split(b_ih, 3, axis=1)
    b_hh_r, b_hh_z, b_hh_n = jnp.split(b_hh, 3, axis=1)
    b_comb = jnp.concatenate([b_ih_r + b_hh_r, b_ih_z + b_hh_z, b_ih_n], axis=1)

    emb_gi = emb_table.astype(jnp.float32) @ w_ih_t + b_comb          # (V, 3H)
    emb_gi = _pad_gates(emb_gi, Hp, axis=1)                           # (V, 3Hp)

    # Time-major gather on the *projected* table.  Pad the tiny (B, T) index
    # array (index 0 is valid; padded batch rows are sliced off at the end) —
    # no (B,T,E) activation or post-gather activation pad is materialized.
    tok = _pad_to(context_tensor.astype(jnp.int32), 0, Bp)            # (Bp, T)
    gi = emb_gi[tok.T].reshape(T * Bp, 3 * Hp)                        # (T*Bp, 3Hp)
    # TODO(synk): store gi in bf16 once T grows large (halves VMEM/DMA bytes).

    # Gate-block-padded recurrent weights (zeros in padded rows/cols keep the
    # padded hidden columns identically zero through the recurrence).
    whh_p = _pad_gates(_pad_to(w_hh_t, 0, Hp), Hp, axis=1).astype(jnp.bfloat16)
    b_hn = _pad_to(b_hh_n, 1, Hp)                                     # (1, Hp)

    wfc_p = _pad_to(_pad_to(w_fc_t, 0, Hp), 1, Op).astype(jnp.bfloat16)   # (Hp, Op)
    bfc_p = _pad_to(b_fc, 1, Op)                                      # (1, Op)

    # Time-chunked "arbitrary" grid; collapses to grid=(1,) at these shapes.
    Tc = _pick_time_chunk(T)
    n_chunks = T // Tc

    flops = 2 * T * Bp * Hp * 3 * Hp + 2 * Bp * Hp * Op
    transcendentals = 3 * T * Bp * Hp
    bytes_accessed = (T * Bp * 3 * Hp * 4 + Hp * 3 * Hp * 2 + Hp * Op * 2
                      + (Hp + Op) * 4 + Bp * Op * 4)

    # Explicit VMEM budget only when the default scoped limit would be hit
    # (double-buffered gi chunk + bf16 weights + carries).
    vmem_est = (2 * Tc * Bp * 3 * Hp * 4 + Hp * 3 * Hp * 2 + Hp * Op * 2
                + (Hp + Op) * 4 + 2 * Bp * Op * 4 + Bp * Hp * 4)
    cp_kwargs = dict(dimension_semantics=("arbitrary",))
    if vmem_est > 16 * 1024 * 1024:
        cp_kwargs["vmem_limit_bytes"] = min(int(vmem_est * 3 // 2),
                                            100 * 1024 * 1024)

    out = pl.pallas_call(
        gru_fc_kernel,
        out_shape=jax.ShapeDtypeStruct((Bp, Op), jnp.float32),
        grid_spec=pltpu.PrefetchScalarGridSpec(
            num_scalar_prefetch=0,
            grid=(n_chunks,),
            in_specs=[
                pl.BlockSpec((Tc * Bp, 3 * Hp), lambda c: (c, 0)),   # gi chunk
                pl.BlockSpec((Hp, 3 * Hp), lambda c: (0, 0)),        # W_hh (bf16)
                pl.BlockSpec((1, Hp), lambda c: (0, 0)),             # b_hh_n
                pl.BlockSpec((Hp, Op), lambda c: (0, 0)),            # W_fc (bf16)
                pl.BlockSpec((1, Op), lambda c: (0, 0)),             # b_fc
            ],
            out_specs=pl.BlockSpec((Bp, Op), lambda c: (0, 0)),
            scratch_shapes=[pltpu.VMEM((Bp, Hp), jnp.float32)],      # carried h
        ),
        compiler_params=pltpu.CompilerParams(**cp_kwargs),
        cost_estimate=pl.CostEstimate(flops=flops,
                                      transcendentals=transcendentals,
                                      bytes_accessed=bytes_accessed),
    )(gi, whh_p, b_hn, wfc_p, bfc_p)

    return out[:B, :O]


def init_params(key, vocab_size, emb_dim, hidden_dim, output_dim):
    ks = jax.random.split(key, 7)
    k_gru = 1.0 / jnp.sqrt(hidden_dim)
    k_fc = 1.0 / jnp.sqrt(hidden_dim)
    u = lambda k, shape, bound: jax.random.uniform(
        k, shape, jnp.float32, -bound, bound)
    return {
        "emb": jax.random.normal(ks[0], (vocab_size, emb_dim), jnp.float32),
        # stored transposed relative to PyTorch's (3H, E)/(3H, H); gate order [r|z|n]
        "w_ih_t": u(ks[1], (emb_dim, 3 * hidden_dim), k_gru),
        "w_hh_t": u(ks[2], (hidden_dim, 3 * hidden_dim), k_gru),
        "b_ih": u(ks[3], (1, 3 * hidden_dim), k_gru),
        "b_hh": u(ks[4], (1, 3 * hidden_dim), k_gru),
        "w_fc_t": u(ks[5], (hidden_dim, output_dim), k_fc),
        "b_fc": u(ks[6], (1, output_dim), k_fc),
    }


def _reference_forward(context_tensor, params):
    """Pure-JAX f32 reference mirroring torch.nn.GRU semantics (gate order r|z|n)."""
    emb = params["emb"][context_tensor].astype(jnp.float32)       # (B, T, E)
    H = params["w_hh_t"].shape[0]
    B = emb.shape[0]

    def step(h, x_t):
        gi = x_t @ params["w_ih_t"] + params["b_ih"]
        gh = h @ params["w_hh_t"] + params["b_hh"]
        r = jax.nn.sigmoid(gi[:, :H] + gh[:, :H])
        z = jax.nn.sigmoid(gi[:, H:2 * H] + gh[:, H:2 * H])
        n = jnp.tanh(gi[:, 2 * H:] + r * gh[:, 2 * H:])
        h_new = (1.0 - z) * n + z * h
        return h_new, None

    h0 = jnp.zeros((B, H), jnp.float32)
    hT, _ = lax.scan(step, h0, jnp.transpose(emb, (1, 0, 2)))
    return hT @ params["w_fc_t"] + params["b_fc"]


if __name__ == "__main__":
    vocab_size, emb_dim, hidden_dim, output_dim = 27, 16, 32, 2
    batch, seq = 2, 8

    key = jax.random.PRNGKey(0)
    k_params, k_tokens = jax.random.split(key)
    params = init_params(k_params, vocab_size, emb_dim, hidden_dim, output_dim)
    context = jax.random.randint(k_tokens, (batch, seq), 0, vocab_size,
                                 dtype=jnp.int32)

    forward = jax.jit(rnn_classifier_forward)   # fuses gather/pad around the call
    logits = forward(context, params)
    logits = jax.block_until_ready(logits)

    ref = _reference_forward(context, params)
    assert logits.shape == (batch, output_dim)
    # bf16 MXU operands (f32 accumulation / f32 gate math) vs. pure-f32 reference.
    assert jnp.allclose(logits, ref, rtol=2e-2, atol=2e-2)

    print("KERNEL_OK")
</pallas_src>

<mosaic_0001>
module attributes {stable_mosaic.version = 11 : i64} {
  func.func @gru_fc_kernel(%arg0: i32, %arg1: memref<64x384xf32, #tpu.memory_space<vmem>>, %arg2: memref<128x384xbf16, #tpu.memory_space<vmem>>, %arg3: memref<1x128xf32, #tpu.memory_space<vmem>>, %arg4: memref<128x128xbf16, #tpu.memory_space<vmem>>, %arg5: memref<1x128xf32, #tpu.memory_space<vmem>>, %arg6: memref<8x128xf32, #tpu.memory_space<vmem>>, %arg7: memref<8x128xf32, #tpu.memory_space<vmem>>) attributes {dimension_semantics = [#tpu.dimension_semantics<arbitrary>], iteration_bounds = array<i64: 1>, scalar_prefetch = 0 : i64, scratch_operands = 1 : i64, tpu.core_type = #tpu.core_type<tc>, window_params = [{transform_indices = @transform_0, window_bounds = array<i64: 64, 384>}, {pipeline_mode = #tpu.pipeline_mode<synchronous>, transform_indices = @transform_1, window_bounds = array<i64: 128, 384>}, {pipeline_mode = #tpu.pipeline_mode<synchronous>, transform_indices = @transform_2, window_bounds = array<i64: 1, 128>}, {pipeline_mode = #tpu.pipeline_mode<synchronous>, transform_indices = @transform_3, window_bounds = array<i64: 128, 128>}, {pipeline_mode = #tpu.pipeline_mode<synchronous>, transform_indices = @transform_4, window_bounds = array<i64: 1, 128>}, {pipeline_mode = #tpu.pipeline_mode<synchronous>, transform_indices = @transform_5, window_bounds = array<i64: 8, 128>}]} {
    %c0_i32 = arith.constant 0 : i32
    %0 = arith.cmpi eq, %arg0, %c0_i32 : i32
    %1 = arith.extui %0 : i1 to i32
    %c0_i32_0 = arith.constant 0 : i32
    %2 = arith.cmpi ne, %1, %c0_i32_0 : i32
    scf.if %2 {
      %cst_72 = arith.constant 0.000000e+00 : f32
      %289 = vector.broadcast %cst_72 : f32 to vector<8x128xf32>
      %c0_73 = arith.constant 0 : index
      %c0_74 = arith.constant 0 : index
      %290 = vector.load %arg7[%c0_73, %c0_74] : memref<8x128xf32, #tpu.memory_space<vmem>>, vector<8x128xf32>
      tpu.vector_store %arg7[%c0_73, %c0_74], %289 {strides = array<i32>} : memref<8x128xf32, #tpu.memory_space<vmem>>, vector<8x128xf32>,
    } else {
    }
    %c0 = arith.constant 0 : index
    %c0_1 = arith.constant 0 : index
    %3 = vector.load %arg3[%c0, %c0_1] : memref<1x128xf32, #tpu.memory_space<vmem>>, vector<1x128xf32>
    %c0_2 = arith.constant 0 : index
    %c0_3 = arith.constant 0 : index
    %4 = vector.load %arg7[%c0_2, %c0_3] : memref<8x128xf32, #tpu.memory_space<vmem>>, vector<8x128xf32>
    %c0_i32_4 = arith.constant 0 : i32
    %c8_i32 = arith.constant 8 : i32
    %5 = arith.muli %c0_i32_4, %c8_i32 : i32
    %6 = tpu.assume_multiple %5, 8 : i32
    %7 = arith.index_cast %6 : i32 to index
    %c0_5 = arith.constant 0 : index
    %8 = vector.load %arg1[%7, %c0_5] : memref<64x384xf32, #tpu.memory_space<vmem>>, vector<8x384xf32>
    %9 = arith.truncf %4 : vector<8x128xf32> to vector<8x128xbf16>
    %c0_6 = arith.constant 0 : index
    %c0_7 = arith.constant 0 : index
    %10 = vector.load %arg2[%c0_6, %c0_7] : memref<128x384xbf16, #tpu.memory_space<vmem>>, vector<128x384xbf16>
    %cst = arith.constant dense<0.000000e+00> : vector<8x384xf32>
    %11 = tpu.matmul %9, %10, %cst {dimension_numbers = #tpu.dot_dimension_numbers<[1], [0], [0], [1], [0, 0, 1, 1], [], []>} : vector<8x128xbf16>, vector<128x384xbf16>, vector<8x384xf32> -> vector<8x384xf32>
    %12 = vector.extract_strided_slice %8 {offsets = [0, 0], sizes = [8, 128], strides = [1, 1]} : vector<8x384xf32> to vector<8x128xf32>
    %13 = vector.extract_strided_slice %11 {offsets = [0, 0], sizes = [8, 128], strides = [1, 1]} : vector<8x384xf32> to vector<8x128xf32>
    %14 = arith.addf %12, %13 : vector<8x128xf32>
    %15 = arith.negf %14 : vector<8x128xf32>
    %16 = math.exp %15 : vector<8x128xf32>
    %cst_8 = arith.constant 1.000000e+00 : f32
    %17 = vector.broadcast %cst_8 : f32 to vector<8x128xf32>
    %18 = arith.addf %17, %16 : vector<8x128xf32>
    %19 = arith.divf %17, %18 : vector<8x128xf32>
    %20 = vector.extract_strided_slice %8 {offsets = [0, 128], sizes = [8, 128], strides = [1, 1]} : vector<8x384xf32> to vector<8x128xf32>
    %21 = vector.extract_strided_slice %11 {offsets = [0, 128], sizes = [8, 128], strides = [1, 1]} : vector<8x384xf32> to vector<8x128xf32>
    %22 = arith.addf %20, %21 : vector<8x128xf32>
    %23 = arith.negf %22 : vector<8x128xf32>
    %24 = math.exp %23 : vector<8x128xf32>
    %cst_9 = arith.constant 1.000000e+00 : f32
    %25 = vector.broadcast %cst_9 : f32 to vector<8x128xf32>
    %26 = arith.addf %25, %24 : vector<8x128xf32>
    %27 = arith.divf %25, %26 : vector<8x128xf32>
    %28 = vector.extract_strided_slice %8 {offsets = [0, 256], sizes = [8, 128], strides = [1, 1]} : vector<8x384xf32> to vector<8x128xf32>
    %29 = vector.extract_strided_slice %11 {offsets = [0, 256], sizes = [8, 128], strides = [1, 1]} : vector<8x384xf32> to vector<8x128xf32>
    %30 = vector.broadcast %3 : vector<1x128xf32> to vector<8x128xf32>
    %31 = arith.addf %29, %30 : vector<8x128xf32>
    %32 = arith.mulf %19, %31 : vector<8x128xf32>
    %33 = arith.addf %28, %32 : vector<8x128xf32>
    %34 = math.tanh %33 : vector<8x128xf32>
    %cst_10 = arith.constant 1.000000e+00 : f32
    %35 = vector.broadcast %cst_10 : f32 to vector<8x128xf32>
    %36 = arith.subf %35, %27 : vector<8x128xf32>
    %37 = arith.mulf %36, %34 : vector<8x128xf32>
    %38 = arith.mulf %27, %4 : vector<8x128xf32>
    %39 = arith.addf %37, %38 : vector<8x128xf32>
    %c1_i32 = arith.constant 1 : i32
    %c8_i32_11 = arith.constant 8 : i32
    %40 = arith.muli %c1_i32, %c8_i32_11 : i32
    %41 = tpu.assume_multiple %40, 8 : i32
    %42 = arith.index_cast %41 : i32 to index
    %c0_12 = arith.constant 0 : index
    %43 = vector.load %arg1[%42, %c0_12] : memref<64x384xf32, #tpu.memory_space<vmem>>, vector<8x384xf32>
    %44 = arith.truncf %39 : vector<8x128xf32> to vector<8x128xbf16>
    %c0_13 = arith.constant 0 : index
    %c0_14 = arith.constant 0 : index
    %45 = vector.load %arg2[%c0_13, %c0_14] : memref<128x384xbf16, #tpu.memory_space<vmem>>, vector<128x384xbf16>
    %cst_15 = arith.constant dense<0.000000e+00> : vector<8x384xf32>
    %46 = tpu.matmul %44, %45, %cst_15 {dimension_numbers = #tpu.dot_dimension_numbers<[1], [0], [0], [1], [0, 0, 1, 1], [], []>} : vector<8x128xbf16>, vector<128x384xbf16>, vector<8x384xf32> -> vector<8x384xf32>
    %47 = vector.extract_strided_slice %43 {offsets = [0, 0], sizes = [8, 128], strides = [1, 1]} : vector<8x384xf32> to vector<8x128xf32>
    %48 = vector.extract_strided_slice %46 {offsets = [0, 0], sizes = [8, 128], strides = [1, 1]} : vector<8x384xf32> to vector<8x128xf32>
    %49 = arith.addf %47, %48 : vector<8x128xf32>
    %50 = arith.negf %49 : vector<8x128xf32>
    %51 = math.exp %50 : vector<8x128xf32>
    %cst_16 = arith.constant 1.000000e+00 : f32
    %52 = vector.broadcast %cst_16 : f32 to vector<8x128xf32>
    %53 = arith.addf %52, %51 : vector<8x128xf32>
    %54 = arith.divf %52, %53 : vector<8x128xf32>
    %55 = vector.extract_strided_slice %43 {offsets = [0, 128], sizes = [8, 128], strides = [1, 1]} : vector<8x384xf32> to vector<8x128xf32>
    %56 = vector.extract_strided_slice %46 {offsets = [0, 128], sizes = [8, 128], strides = [1, 1]} : vector<8x384xf32> to vector<8x128xf32>
    %57 = arith.addf %55, %56 : vector<8x128xf32>
    %58 = arith.negf %57 : vector<8x128xf32>
    %59 = math.exp %58 : vector<8x128xf32>
    %cst_17 = arith.constant 1.000000e+00 : f32
    %60 = vector.broadcast %cst_17 : f32 to vector<8x128xf32>
    %61 = arith.addf %60, %59 : vector<8x128xf32>
    %62 = arith.divf %60, %61 : vector<8x128xf32>
    %63 = vector.extract_strided_slice %43 {offsets = [0, 256], sizes = [8, 128], strides = [1, 1]} : vector<8x384xf32> to vector<8x128xf32>
    %64 = vector.extract_strided_slice %46 {offsets = [0, 256], sizes = [8, 128], strides = [1, 1]} : vector<8x384xf32> to vector<8x128xf32>
    %65 = vector.broadcast %3 : vector<1x128xf32> to vector<8x128xf32>
    %66 = arith.addf %64, %65 : vector<8x128xf32>
    %67 = arith.mulf %54, %66 : vector<8x128xf32>
    %68 = arith.addf %63, %67 : vector<8x128xf32>
    %69 = math.tanh %68 : vector<8x128xf32>
    %cst_18 = arith.constant 1.000000e+00 : f32
    %70 = vector.broadcast %cst_18 : f32 to vector<8x128xf32>
    %71 = arith.subf %70, %62 : vector<8x128xf32>
    %72 = arith.mulf %71, %69 : vector<8x128xf32>
    %73 = arith.mulf %62, %39 : vector<8x128xf32>
    %74 = arith.addf %72, %73 : vector<8x128xf32>
    %c2_i32 = arith.constant 2 : i32
    %c8_i32_19 = arith.constant 8 : i32
    %75 = arith.muli %c2_i32, %c8_i32_19 : i32
    %76 = tpu.assume_multiple %75, 8 : i32
    %77 = arith.index_cast %76 : i32 to index
    %c0_20 = arith.constant 0 : index
    %78 = vector.load %arg1[%77, %c0_20] : memref<64x384xf32, #tpu.memory_space<vmem>>, vector<8x384xf32>
    %79 = arith.truncf %74 : vector<8x128xf32> to vector<8x128xbf16>
    %c0_21 = arith.constant 0 : index
    %c0_22 = arith.constant 0 : index
    %80 = vector.load %arg2[%c0_21, %c0_22] : memref<128x384xbf16, #tpu.memory_space<vmem>>, vector<128x384xbf16>
    %cst_23 = arith.constant dense<0.000000e+00> : vector<8x384xf32>
    %81 = tpu.matmul %79, %80, %cst_23 {dimension_numbers = #tpu.dot_dimension_numbers<[1], [0], [0], [1], [0, 0, 1, 1], [], []>} : vector<8x128xbf16>, vector<128x384xbf16>, vector<8x384xf32> -> vector<8x384xf32>
    %82 = vector.extract_strided_slice %78 {offsets = [0, 0], sizes = [8, 128], strides = [1, 1]} : vector<8x384xf32> to vector<8x128xf32>
    %83 = vector.extract_strided_slice %81 {offsets = [0, 0], sizes = [8, 128], strides = [1, 1]} : vector<8x384xf32> to vector<8x128xf32>
    %84 = arith.addf %82, %83 : vector<8x128xf32>
    %85 = arith.negf %84 : vector<8x128xf32>
    %86 = math.exp %85 : vector<8x128xf32>
    %cst_24 = arith.constant 1.000000e+00 : f32
    %87 = vector.broadcast %cst_24 : f32 to vector<8x128xf32>
    %88 = arith.addf %87, %86 : vector<8x128xf32>
    %89 = arith.divf %87, %88 : vector<8x128xf32>
    %90 = vector.extract_strided_slice %78 {offsets = [0, 128], sizes = [8, 128], strides = [1, 1]} : vector<8x384xf32> to vector<8x128xf32>
    %91 = vector.extract_strided_slice %81 {offsets = [0, 128], sizes = [8, 128], strides = [1, 1]} : vector<8x384xf32> to vector<8x128xf32>
    %92 = arith.addf %90, %91 : vector<8x128xf32>
    %93 = arith.negf %92 : vector<8x128xf32>
    %94 = math.exp %93 : vector<8x128xf32>
    %cst_25 = arith.constant 1.000000e+00 : f32
    %95 = vector.broadcast %cst_25 : f32 to vector<8x128xf32>
    %96 = arith.addf %95, %94 : vector<8x128xf32>
    %97 = arith.divf %95, %96 : vector<8x128xf32>
    %98 = vector.extract_strided_slice %78 {offsets = [0, 256], sizes = [8, 128], strides = [1, 1]} : vector<8x384xf32> to vector<8x128xf32>
    %99 = vector.extract_strided_slice %81 {offsets = [0, 256], sizes = [8, 128], strides = [1, 1]} : vector<8x384xf32> to vector<8x128xf32>
    %100 = vector.broadcast %3 : vector<1x128xf32> to vector<8x128xf32>
    %101 = arith.addf %99, %100 : vector<8x128xf32>
    %102 = arith.mulf %89, %101 : vector<8x128xf32>
    %103 = arith.addf %98, %102 : vector<8x128xf32>
    %104 = math.tanh %103 : vector<8x128xf32>
    %cst_26 = arith.constant 1.000000e+00 : f32
    %105 = vector.broadcast %cst_26 : f32 to vector<8x128xf32>
    %106 = arith.subf %105, %97 : vector<8x128xf32>
    %107 = arith.mulf %106, %104 : vector<8x128xf32>
    %108 = arith.mulf %97, %74 : vector<8x128xf32>
    %109 = arith.addf %107, %108 : vector<8x128xf32>
    %c3_i32 = arith.constant 3 : i32
    %c8_i32_27 = arith.constant 8 : i32
    %110 = arith.muli %c3_i32, %c8_i32_27 : i32
    %111 = tpu.assume_multiple %110, 8 : i32
    %112 = arith.index_cast %111 : i32 to index
    %c0_28 = arith.constant 0 : index
    %113 = vector.load %arg1[%112, %c0_28] : memref<64x384xf32, #tpu.memory_space<vmem>>, vector<8x384xf32>
    %114 = arith.truncf %109 : vector<8x128xf32> to vector<8x128xbf16>
    %c0_29 = arith.constant 0 : index
    %c0_30 = arith.constant 0 : index
    %115 = vector.load %arg2[%c0_29, %c0_30] : memref<128x384xbf16, #tpu.memory_space<vmem>>, vector<128x384xbf16>
    %cst_31 = arith.constant dense<0.000000e+00> : vector<8x384xf32>
    %116 = tpu.matmul %114, %115, %cst_31 {dimension_numbers = #tpu.dot_dimension_numbers<[1], [0], [0], [1], [0, 0, 1, 1], [], []>} : vector<8x128xbf16>, vector<128x384xbf16>, vector<8x384xf32> -> vector<8x384xf32>
    %117 = vector.extract_strided_slice %113 {offsets = [0, 0], sizes = [8, 128], strides = [1, 1]} : vector<8x384xf32> to vector<8x128xf32>
    %118 = vector.extract_strided_slice %116 {offsets = [0, 0], sizes = [8, 128], strides = [1, 1]} : vector<8x384xf32> to vector<8x128xf32>
    %119 = arith.addf %117, %118 : vector<8x128xf32>
    %120 = arith.negf %119 : vector<8x128xf32>
    %121 = math.exp %120 : vector<8x128xf32>
    %cst_32 = arith.constant 1.000000e+00 : f32
    %122 = vector.broadcast %cst_32 : f32 to vector<8x128xf32>
    %123 = arith.addf %122, %121 : vector<8x128xf32>
    %124 = arith.divf %122, %123 : vector<8x128xf32>
    %125 = vector.extract_strided_slice %113 {offsets = [0, 128], sizes = [8, 128], strides = [1, 1]} : vector<8x384xf32> to vector<8x128xf32>
    %126 = vector.extract_strided_slice %116 {offsets = [0, 128], sizes = [8, 128], strides = [1, 1]} : vector<8x384xf32> to vector<8x128xf32>
    %127 = arith.addf %125, %126 : vector<8x128xf32>
    %128 = arith.negf %127 : vector<8x128xf32>
    %129 = math.exp %128 : vector<8x128xf32>
    %cst_33 = arith.constant 1.000000e+00 : f32
    %130 = vector.broadcast %cst_33 : f32 to vector<8x128xf32>
    %131 = arith.addf %130, %129 : vector<8x128xf32>
    %132 = arith.divf %130, %131 : vector<8x128xf32>
    %133 = vector.extract_strided_slice %113 {offsets = [0, 256], sizes = [8, 128], strides = [1, 1]} : vector<8x384xf32> to vector<8x128xf32>
    %134 = vector.extract_strided_slice %116 {offsets = [0, 256], sizes = [8, 128], strides = [1, 1]} : vector<8x384xf32> to vector<8x128xf32>
    %135 = vector.broadcast %3 : vector<1x128xf32> to vector<8x128xf32>
    %136 = arith.addf %134, %135 : vector<8x128xf32>
    %137 = arith.mulf %124, %136 : vector<8x128xf32>
    %138 = arith.addf %133, %137 : vector<8x128xf32>
    %139 = math.tanh %138 : vector<8x128xf32>
    %cst_34 = arith.constant 1.000000e+00 : f32
    %140 = vector.broadcast %cst_34 : f32 to vector<8x128xf32>
    %141 = arith.subf %140, %132 : vector<8x128xf32>
    %142 = arith.mulf %141, %139 : vector<8x128xf32>
    %143 = arith.mulf %132, %109 : vector<8x128xf32>
    %144 = arith.addf %142, %143 : vector<8x128xf32>
    %c4_i32 = arith.constant 4 : i32
    %c8_i32_35 = arith.constant 8 : i32
    %145 = arith.muli %c4_i32, %c8_i32_35 : i32
    %146 = tpu.assume_multiple %145, 8 : i32
    %147 = arith.index_cast %146 : i32 to index
    %c0_36 = arith.constant 0 : index
    %148 = vector.load %arg1[%147, %c0_36] : memref<64x384xf32, #tpu.memory_space<vmem>>, vector<8x384xf32>
    %149 = arith.truncf %144 : vector<8x128xf32> to vector<8x128xbf16>
    %c0_37 = arith.constant 0 : index
    %c0_38 = arith.constant 0 : index
    %150 = vector.load %arg2[%c0_37, %c0_38] : memref<128x384xbf16, #tpu.memory_space<vmem>>, vector<128x384xbf16>
    %cst_39 = arith.constant dense<0.000000e+00> : vector<8x384xf32>
    %151 = tpu.matmul %149, %150, %cst_39 {dimension_numbers = #tpu.dot_dimension_numbers<[1], [0], [0], [1], [0, 0, 1, 1], [], []>} : vector<8x128xbf16>, vector<128x384xbf16>, vector<8x384xf32> -> vector<8x384xf32>
    %152 = vector.extract_strided_slice %148 {offsets = [0, 0], sizes = [8, 128], strides = [1, 1]} : vector<8x384xf32> to vector<8x128xf32>
    %153 = vector.extract_strided_slice %151 {offsets = [0, 0], sizes = [8, 128], strides = [1, 1]} : vector<8x384xf32> to vector<8x128xf32>
    %154 = arith.addf %152, %153 : vector<8x128xf32>
    %155 = arith.negf %154 : vector<8x128xf32>
    %156 = math.exp %155 : vector<8x128xf32>
    %cst_40 = arith.constant 1.000000e+00 : f32
    %157 = vector.broadcast %cst_40 : f32 to vector<8x128xf32>
    %158 = arith.addf %157, %156 : vector<8x128xf32>
    %159 = arith.divf %157, %158 : vector<8x128xf32>
    %160 = vector.extract_strided_slice %148 {offsets = [0, 128], sizes = [8, 128], strides = [1, 1]} : vector<8x384xf32> to vector<8x128xf32>
    %161 = vector.extract_strided_slice %151 {offsets = [0, 128], sizes = [8, 128], strides = [1, 1]} : vector<8x384xf32> to vector<8x128xf32>
    %162 = arith.addf %160, %161 : vector<8x128xf32>
    %163 = arith.negf %162 : vector<8x128xf32>
    %164 = math.exp %163 : vector<8x128xf32>
    %cst_41 = arith.constant 1.000000e+00 : f32
    %165 = vector.broadcast %cst_41 : f32 to vector<8x128xf32>
    %166 = arith.addf %165, %164 : vector<8x128xf32>
    %167 = arith.divf %165, %166 : vector<8x128xf32>
    %168 = vector.extract_strided_slice %148 {offsets = [0, 256], sizes = [8, 128], strides = [1, 1]} : vector<8x384xf32> to vector<8x128xf32>
    %169 = vector.extract_strided_slice %151 {offsets = [0, 256], sizes = [8, 128], strides = [1, 1]} : vector<8x384xf32> to vector<8x128xf32>
    %170 = vector.broadcast %3 : vector<1x128xf32> to vector<8x128xf32>
    %171 = arith.addf %169, %170 : vector<8x128xf32>
    %172 = arith.mulf %159, %171 : vector<8x128xf32>
    %173 = arith.addf %168, %172 : vector<8x128xf32>
    %174 = math.tanh %173 : vector<8x128xf32>
    %cst_42 = arith.constant 1.000000e+00 : f32
    %175 = vector.broadcast %cst_42 : f32 to vector<8x128xf32>
    %176 = arith.subf %175, %167 : vector<8x128xf32>
    %177 = arith.mulf %176, %174 : vector<8x128xf32>
    %178 = arith.mulf %167, %144 : vector<8x128xf32>
    %179 = arith.addf %177, %178 : vector<8x128xf32>
    %c5_i32 = arith.constant 5 : i32
    %c8_i32_43 = arith.constant 8 : i32
    %180 = arith.muli %c5_i32, %c8_i32_43 : i32
    %181 = tpu.assume_multiple %180, 8 : i32
    %182 = arith.index_cast %181 : i32 to index
    %c0_44 = arith.constant 0 : index
    %183 = vector.load %arg1[%182, %c0_44] : memref<64x384xf32, #tpu.memory_space<vmem>>, vector<8x384xf32>
    %184 = arith.truncf %179 : vector<8x128xf32> to vector<8x128xbf16>
    %c0_45 = arith.constant 0 : index
    %c0_46 = arith.constant 0 : index
    %185 = vector.load %arg2[%c0_45, %c0_46] : memref<128x384xbf16, #tpu.memory_space<vmem>>, vector<128x384xbf16>
    %cst_47 = arith.constant dense<0.000000e+00> : vector<8x384xf32>
    %186 = tpu.matmul %184, %185, %cst_47 {dimension_numbers = #tpu.dot_dimension_numbers<[1], [0], [0], [1], [0, 0, 1, 1], [], []>} : vector<8x128xbf16>, vector<128x384xbf16>, vector<8x384xf32> -> vector<8x384xf32>
    %187 = vector.extract_strided_slice %183 {offsets = [0, 0], sizes = [8, 128], strides = [1, 1]} : vector<8x384xf32> to vector<8x128xf32>
    %188 = vector.extract_strided_slice %186 {offsets = [0, 0], sizes = [8, 128], strides = [1, 1]} : vector<8x384xf32> to vector<8x128xf32>
    %189 = arith.addf %187, %188 : vector<8x128xf32>
    %190 = arith.negf %189 : vector<8x128xf32>
    %191 = math.exp %190 : vector<8x128xf32>
    %cst_48 = arith.constant 1.000000e+00 : f32
    %192 = vector.broadcast %cst_48 : f32 to vector<8x128xf32>
    %193 = arith.addf %192, %191 : vector<8x128xf32>
    %194 = arith.divf %192, %193 : vector<8x128xf32>
    %195 = vector.extract_strided_slice %183 {offsets = [0, 128], sizes = [8, 128], strides = [1, 1]} : vector<8x384xf32> to vector<8x128xf32>
    %196 = vector.extract_strided_slice %186 {offsets = [0, 128], sizes = [8, 128], strides = [1, 1]} : vector<8x384xf32> to vector<8x128xf32>
    %197 = arith.addf %195, %196 : vector<8x128xf32>
    %198 = arith.negf %197 : vector<8x128xf32>
    %199 = math.exp %198 : vector<8x128xf32>
    %cst_49 = arith.constant 1.000000e+00 : f32
    %200 = vector.broadcast %cst_49 : f32 to vector<8x128xf32>
    %201 = arith.addf %200, %199 : vector<8x128xf32>
    %202 = arith.divf %200, %201 : vector<8x128xf32>
    %203 = vector.extract_strided_slice %183 {offsets = [0, 256], sizes = [8, 128], strides = [1, 1]} : vector<8x384xf32> to vector<8x128xf32>
    %204 = vector.extract_strided_slice %186 {offsets = [0, 256], sizes = [8, 128], strides = [1, 1]} : vector<8x384xf32> to vector<8x128xf32>
    %205 = vector.broadcast %3 : vector<1x128xf32> to vector<8x128xf32>
    %206 = arith.addf %204, %205 : vector<8x128xf32>
    %207 = arith.mulf %194, %206 : vector<8x128xf32>
    %208 = arith.addf %203, %207 : vector<8x128xf32>
    %209 = math.tanh %208 : vector<8x128xf32>
    %cst_50 = arith.constant 1.000000e+00 : f32
    %210 = vector.broadcast %cst_50 : f32 to vector<8x128xf32>
    %211 = arith.subf %210, %202 : vector<8x128xf32>
    %212 = arith.mulf %211, %209 : vector<8x128xf32>
    %213 = arith.mulf %202, %179 : vector<8x128xf32>
    %214 = arith.addf %212, %213 : vector<8x128xf32>
    %c6_i32 = arith.constant 6 : i32
    %c8_i32_51 = arith.constant 8 : i32
    %215 = arith.muli %c6_i32, %c8_i32_51 : i32
    %216 = tpu.assume_multiple %215, 8 : i32
    %217 = arith.index_cast %216 : i32 to index
    %c0_52 = arith.constant 0 : index
    %218 = vector.load %arg1[%217, %c0_52] : memref<64x384xf32, #tpu.memory_space<vmem>>, vector<8x384xf32>
    %219 = arith.truncf %214 : vector<8x128xf32> to vector<8x128xbf16>
    %c0_53 = arith.constant 0 : index
    %c0_54 = arith.constant 0 : index
    %220 = vector.load %arg2[%c0_53, %c0_54] : memref<128x384xbf16, #tpu.memory_space<vmem>>, vector<128x384xbf16>
    %cst_55 = arith.constant dense<0.000000e+00> : vector<8x384xf32>
    %221 = tpu.matmul %219, %220, %cst_55 {dimension_numbers = #tpu.dot_dimension_numbers<[1], [0], [0], [1], [0, 0, 1, 1], [], []>} : vector<8x128xbf16>, vector<128x384xbf16>, vector<8x384xf32> -> vector<8x384xf32>
    %222 = vector.extract_strided_slice %218 {offsets = [0, 0], sizes = [8, 128], strides = [1, 1]} : vector<8x384xf32> to vector<8x128xf32>
    %223 = vector.extract_strided_slice %221 {offsets = [0, 0], sizes = [8, 128], strides = [1, 1]} : vector<8x384xf32> to vector<8x128xf32>
    %224 = arith.addf %222, %223 : vector<8x128xf32>
    %225 = arith.negf %224 : vector<8x128xf32>
    %226 = math.exp %225 : vector<8x128xf32>
    %cst_56 = arith.constant 1.000000e+00 : f32
    %227 = vector.broadcast %cst_56 : f32 to vector<8x128xf32>
    %228 = arith.addf %227, %226 : vector<8x128xf32>
    %229 = arith.divf %227, %228 : vector<8x128xf32>
    %230 = vector.extract_strided_slice %218 {offsets = [0, 128], sizes = [8, 128], strides = [1, 1]} : vector<8x384xf32> to vector<8x128xf32>
    %231 = vector.extract_strided_slice %221 {offsets = [0, 128], sizes = [8, 128], strides = [1, 1]} : vector<8x384xf32> to vector<8x128xf32>
    %232 = arith.addf %230, %231 : vector<8x128xf32>
    %233 = arith.negf %232 : vector<8x128xf32>
    %234 = math.exp %233 : vector<8x128xf32>
    %cst_57 = arith.constant 1.000000e+00 : f32
    %235 = vector.broadcast %cst_57 : f32 to vector<8x128xf32>
    %236 = arith.addf %235, %234 : vector<8x128xf32>
    %237 = arith.divf %235, %236 : vector<8x128xf32>
    %238 = vector.extract_strided_slice %218 {offsets = [0, 256], sizes = [8, 128], strides = [1, 1]} : vector<8x384xf32> to vector<8x128xf32>
    %239 = vector.extract_strided_slice %221 {offsets = [0, 256], sizes = [8, 128], strides = [1, 1]} : vector<8x384xf32> to vector<8x128xf32>
    %240 = vector.broadcast %3 : vector<1x128xf32> to vector<8x128xf32>
    %241 = arith.addf %239, %240 : vector<8x128xf32>
    %242 = arith.mulf %229, %241 : vector<8x128xf32>
    %243 = arith.addf %238, %242 : vector<8x128xf32>
    %244 = math.tanh %243 : vector<8x128xf32>
    %cst_58 = arith.constant 1.000000e+00 : f32
    %245 = vector.broadcast %cst_58 : f32 to vector<8x128xf32>
    %246 = arith.subf %245, %237 : vector<8x128xf32>
    %247 = arith.mulf %246, %244 : vector<8x128xf32>
    %248 = arith.mulf %237, %214 : vector<8x128xf32>
    %249 = arith.addf %247, %248 : vector<8x128xf32>
    %c7_i32 = arith.constant 7 : i32
    %c8_i32_59 = arith.constant 8 : i32
    %250 = arith.muli %c7_i32, %c8_i32_59 : i32
    %251 = tpu.assume_multiple %250, 8 : i32
    %252 = arith.index_cast %251 : i32 to index
    %c0_60 = arith.constant 0 : index
    %253 = vector.load %arg1[%252, %c0_60] : memref<64x384xf32, #tpu.memory_space<vmem>>, vector<8x384xf32>
    %254 = arith.truncf %249 : vector<8x128xf32> to vector<8x128xbf16>
    %c0_61 = arith.constant 0 : index
    %c0_62 = arith.constant 0 : index
    %255 = vector.load %arg2[%c0_61, %c0_62] : memref<128x384xbf16, #tpu.memory_space<vmem>>, vector<128x384xbf16>
    %cst_63 = arith.constant dense<0.000000e+00> : vector<8x384xf32>
    %256 = tpu.matmul %254, %255, %cst_63 {dimension_numbers = #tpu.dot_dimension_numbers<[1], [0], [0], [1], [0, 0, 1, 1], [], []>} : vector<8x128xbf16>, vector<128x384xbf16>, vector<8x384xf32> -> vector<8x384xf32>
    %257 = vector.extract_strided_slice %253 {offsets = [0, 0], sizes = [8, 128], strides = [1, 1]} : vector<8x384xf32> to vector<8x128xf32>
    %258 = vector.extract_strided_slice %256 {offsets = [0, 0], sizes = [8, 128], strides = [1, 1]} : vector<8x384xf32> to vector<8x128xf32>
    %259 = arith.addf %257, %258 : vector<8x128xf32>
    %260 = arith.negf %259 : vector<8x128xf32>
    %261 = math.exp %260 : vector<8x128xf32>
    %cst_64 = arith.constant 1.000000e+00 : f32
    %262 = vector.broadcast %cst_64 : f32 to vector<8x128xf32>
    %263 = arith.addf %262, %261 : vector<8x128xf32>
    %264 = arith.divf %262, %263 : vector<8x128xf32>
    %265 = vector.extract_strided_slice %253 {offsets = [0, 128], sizes = [8, 128], strides = [1, 1]} : vector<8x384xf32> to vector<8x128xf32>
    %266 = vector.extract_strided_slice %256 {offsets = [0, 128], sizes = [8, 128], strides = [1, 1]} : vector<8x384xf32> to vector<8x128xf32>
    %267 = arith.addf %265, %266 : vector<8x128xf32>
    %268 = arith.negf %267 : vector<8x128xf32>
    %269 = math.exp %268 : vector<8x128xf32>
    %cst_65 = arith.constant 1.000000e+00 : f32
    %270 = vector.broadcast %cst_65 : f32 to vector<8x128xf32>
    %271 = arith.addf %270, %269 : vector<8x128xf32>
    %272 = arith.divf %270, %271 : vector<8x128xf32>
    %273 = vector.extract_strided_slice %253 {offsets = [0, 256], sizes = [8, 128], strides = [1, 1]} : vector<8x384xf32> to vector<8x128xf32>
    %274 = vector.extract_strided_slice %256 {offsets = [0, 256], sizes = [8, 128], strides = [1, 1]} : vector<8x384xf32> to vector<8x128xf32>
    %275 = vector.broadcast %3 : vector<1x128xf32> to vector<8x128xf32>
    %276 = arith.addf %274, %275 : vector<8x128xf32>
    %277 = arith.mulf %264, %276 : vector<8x128xf32>
    %278 = arith.addf %273, %277 : vector<8x128xf32>
    %279 = math.tanh %278 : vector<8x128xf32>
    %cst_66 = arith.constant 1.000000e+00 : f32
    %280 = vector.broadcast %cst_66 : f32 to vector<8x128xf32>
    %281 = arith.subf %280, %272 : vector<8x128xf32>
    %282 = arith.mulf %281, %279 : vector<8x128xf32>
    %283 = arith.mulf %272, %249 : vector<8x128xf32>
    %284 = arith.addf %282, %283 : vector<8x128xf32>
    %c8_i32_67 = arith.constant 8 : i32
    %c0_68 = arith.constant 0 : index
    %c0_69 = arith.constant 0 : index
    %285 = vector.load %arg7[%c0_68, %c0_69] : memref<8x128xf32, #tpu.memory_space<vmem>>, vector<8x128xf32>
    tpu.vector_store %arg7[%c0_68, %c0_69], %284 {strides = array<i32>} : memref<8x128xf32, #tpu.memory_space<vmem>>, vector<8x128xf32>,
    %c0_i32_70 = arith.constant 0 : i32
    %286 = arith.cmpi eq, %arg0, %c0_i32_70 : i32
    %287 = arith.extui %286 : i1 to i32
    %c0_i32_71 = arith.constant 0 : i32
    %288 = arith.cmpi ne, %287, %c0_i32_71 : i32
    scf.if %288 {
      %c0_72 = arith.constant 0 : index
      %c0_73 = arith.constant 0 : index
      %289 = vector.load %arg7[%c0_72, %c0_73] : memref<8x128xf32, #tpu.memory_space<vmem>>, vector<8x128xf32>
      %290 = arith.truncf %289 : vector<8x128xf32> to vector<8x128xbf16>
      %c0_74 = arith.constant 0 : index
      %c0_75 = arith.constant 0 : index
      %291 = vector.load %arg4[%c0_74, %c0_75] : memref<128x128xbf16, #tpu.memory_space<vmem>>, vector<128x128xbf16>
      %cst_76 = arith.constant dense<0.000000e+00> : vector<8x128xf32>
      %292 = tpu.matmul %290, %291, %cst_76 {dimension_numbers = #tpu.dot_dimension_numbers<[1], [0], [0], [1], [0, 0, 1, 1], [], []>} : vector<8x128xbf16>, vector<128x128xbf16>, vector<8x128xf32> -> vector<8x128xf32>
      %c0_77 = arith.constant 0 : index
      %c0_78 = arith.constant 0 : index
      %293 = vector.load %arg5[%c0_77, %c0_78] : memref<1x128xf32, #tpu.memory_space<vmem>>, vector<1x128xf32>
      %294 = vector.broadcast %293 : vector<1x128xf32> to vector<8x128xf32>
      %295 = arith.addf %292, %294 : vector<8x128xf32>
      %c0_79 = arith.constant 0 : index
      %c0_80 = arith.constant 0 : index
      %296 = vector.load %arg6[%c0_79, %c0_80] : memref<8x128xf32, #tpu.memory_space<vmem>>, vector<8x128xf32>
      tpu.vector_store %arg6[%c0_79, %c0_80], %295 {strides = array<i32>} : memref<8x128xf32, #tpu.memory_space<vmem>>, vector<8x128xf32>,
    } else {
    }
    return
  }
  func.func @transform_0(%arg0: i32) -> (i32, i32) {
    %c0_i32 = arith.constant 0 : i32
    %c0_i32_0 = arith.constant 0 : i32
    return %arg0, %c0_i32 : i32, i32
  }
  func.func @transform_1(%arg0: i32) -> (i32, i32) {
    %c0_i32 = arith.constant 0 : i32
    %c0_i32_0 = arith.constant 0 : i32
    %c0_i32_1 = arith.constant 0 : i32
    return %c0_i32, %c0_i32_0 : i32, i32
  }
  func.func @transform_2(%arg0: i32) -> (i32, i32) {
    %c0_i32 = arith.constant 0 : i32
    %c0_i32_0 = arith.constant 0 : i32
    %c0_i32_1 = arith.constant 0 : i32
    return %c0_i32, %c0_i32_0 : i32, i32
  }
  func.func @transform_3(%arg0: i32) -> (i32, i32) {
    %c0_i32 = arith.constant 0 : i32
    %c0_i32_0 = arith.constant 0 : i32
    %c0_i32_1 = arith.constant 0 : i32
    return %c0_i32, %c0_i32_0 : i32, i32
  }
  func.func @transform_4(%arg0: i32) -> (i32, i32) {
    %c0_i32 = arith.constant 0 : i32
    %c0_i32_0 = arith.constant 0 : i32
    %c0_i32_1 = arith.constant 0 : i32
    return %c0_i32, %c0_i32_0 : i32, i32
  }
  func.func @transform_5(%arg0: i32) -> (i32, i32) {
    %c0_i32 = arith.constant 0 : i32
    %c0_i32_0 = arith.constant 0 : i32
    %c0_i32_1 = arith.constant 0 : i32
    return %c0_i32, %c0_i32_0 : i32, i32
  }
}

</mosaic_0001>

<llo_original>
// kernel: rnn_classifier_forward.1
$region0: #{rnn_classifier_forward.1}
  #allocation0 [shape = 'u32[]', space=smem, size = 0x4, offset = 0x4, fixed_abs, tag = 'smem constant byte address 0x4 - core index']
  #allocation1 [shape = 'u32[72,128]{1,0:T(1,128)}', space=vmem, size = 0x9000, scoped, tag = 'internal scratch']
  #allocation2 [shape = 'f32[8,128]{1,0:T(8,128)}', space=vmem, size = 0x1000, scoped, tag = 'scratch operand']
  %s0 = inlined_call_operand.vmem [shape: f32[64,384], index: 0, kind: input, shape index: {}]
  %s1 = inlined_call_operand.vmem [shape: bf16[128,384], index: 1, kind: input, shape index: {}]
  %s2 = inlined_call_operand.vmem [shape: f32[1,128], index: 2, kind: input, shape index: {}]
  %s3 = inlined_call_operand.vmem [shape: bf16[128,128], index: 3, kind: input, shape index: {}]
  %s4 = inlined_call_operand.vmem [shape: f32[1,128], index: 4, kind: input, shape index: {}]
  %s5 = inlined_call_operand.vmem [shape: f32[8,128], index: 5, kind: output, shape index: {}]
  %s6 = sld [smem:[#allocation0]]
  $region38: #{rnn_classifier_forward.1} parent=0
    _
  %s8 = ssub.s32 1, %s6
  %s9 = scalar_select 0, %s8, %s6
  // Predicated region
  $region2: #{rnn_classifier_forward.1} parent=0 // pred_check
    _
  $region3: #{rnn_classifier_forward.1} parent=0 // pred_check_branch
    %11 = sbr.rel (0) target = $region5
  $region4: #{rnn_classifier_forward.1} parent=0 // pred_region
    _
  $region5: #{rnn_classifier_forward.1} parent=0 // pred_fallthru
    _
  // Predicated region
  $region6: #{rnn_classifier_forward.1} parent=0 // pred_check
    _
  $region7: #{rnn_classifier_forward.1} parent=0 // pred_check_branch
    %13 = sbr.rel (0) target = $region9
  $region8: #{rnn_classifier_forward.1} parent=0 // pred_region
    _
  $region9: #{rnn_classifier_forward.1} parent=0 // pred_fallthru
    _
  // Predicated region
  $region10: #{rnn_classifier_forward.1} parent=0 // pred_check
    _
  $region11: #{rnn_classifier_forward.1} parent=0 // pred_check_branch
    %15 = sbr.rel (0) target = $region13
  $region12: #{rnn_classifier_forward.1} parent=0 // pred_region
    _
  $region13: #{rnn_classifier_forward.1} parent=0 // pred_fallthru
    _
  // Predicated region
  $region14: #{rnn_classifier_forward.1} parent=0 // pred_check
    _
  $region15: #{rnn_classifier_forward.1} parent=0 // pred_check_branch
    %17 = sbr.rel (0) target = $region17
  $region16: #{rnn_classifier_forward.1} parent=0 // pred_region
    _
  $region17: #{rnn_classifier_forward.1} parent=0 // pred_fallthru
    _
  // Predicated region
  $region18: #{rnn_classifier_forward.1} parent=0 // pred_check
    _
  $region19: #{rnn_classifier_forward.1} parent=0 // pred_check_branch
    %19 = sbr.rel (0) target = $region21
  $region20: #{rnn_classifier_forward.1} parent=0 // pred_region
    _
  $region21: #{rnn_classifier_forward.1} parent=0 // pred_fallthru
    _
  %p20 = scmp.eq.s32.totalorder 0, 0
  // Predicated region
  $region22: #{rnn_classifier_forward.1} parent=0 // pred_check
    %p21 = pneg %p20
  $region23: #{rnn_classifier_forward.1} parent=0 // pred_check_branch
    %23 = sbr.rel (%p21) target = $region25
  $region24: #{rnn_classifier_forward.1} parent=0 // pred_region
    %24 = vst [vmem:[#allocation2] sm:$0xff] 0.0
  $region25: #{rnn_classifier_forward.1} parent=0 // pred_fallthru
    _
  %v25 = vld [vmem:[%s2] sm:$0x1]
  %v26 = vld [vmem:[#allocation2] sm:$0xff]
  %s27 = smul.u32 0, 3
  %s28 = smul.addr %s27, 8
  %s29 = scalar_lea.vmem %s0, %s28
  %v30 = vld [vmem:[%s29] sm:$0xff]
  %v31 = vld [vmem:[%s29 + $0x8] sm:$0xff]
  %v32 = vld [vmem:[%s29 + $0x10] sm:$0xff]
  %v33 = vpack.c.bf16 %v26, %v26
  %v34 = vld [vmem:[%s1] sm:$0xff]
  %v35 = vld [vmem:[%s1 + $0x8] sm:$0xf]
  %v36 = vld [vmem:[%s1 + $0xc] sm:$0xff]
  %v37 = vld [vmem:[%s1 + $0x14] sm:$0xf]
  %v38 = vld [vmem:[%s1 + $0x18] sm:$0xff]
  %v39 = vld [vmem:[%s1 + $0x20] sm:$0xf]
  %v40 = vld [vmem:[%s1 + $0x24] sm:$0xff]
  %v41 = vld [vmem:[%s1 + $0x2c] sm:$0xf]
  %v42 = vld [vmem:[%s1 + $0x30] sm:$0xff]
  %v43 = vld [vmem:[%s1 + $0x38] sm:$0xf]
  %v44 = vld [vmem:[%s1 + $0x3c] sm:$0xff]
  %v45 = vld [vmem:[%s1 + $0x44] sm:$0xf]
  %v46 = vld [vmem:[%s1 + $0x48] sm:$0xff]
  %v47 = vld [vmem:[%s1 + $0x50] sm:$0xf]
  %v48 = vld [vmem:[%s1 + $0x54] sm:$0xff]
  %v49 = vld [vmem:[%s1 + $0x5c] sm:$0xf]
  %v50 = vld [vmem:[%s1 + $0x60] sm:$0xff]
  %v51 = vld [vmem:[%s1 + $0x68] sm:$0xf]
  %v52 = vld [vmem:[%s1 + $0x6c] sm:$0xff]
  %v53 = vld [vmem:[%s1 + $0x74] sm:$0xf]
  %v54 = vld [vmem:[%s1 + $0x78] sm:$0xff]
  %v55 = vld [vmem:[%s1 + $0x80] sm:$0xf]
  %v56 = vld [vmem:[%s1 + $0x84] sm:$0xff]
  %v57 = vld [vmem:[%s1 + $0x8c] sm:$0xf]
  %v58 = vld [vmem:[%s1 + $0x90] sm:$0xff]
  %v59 = vld [vmem:[%s1 + $0x98] sm:$0xf]
  %v60 = vld [vmem:[%s1 + $0x9c] sm:$0xff]
  %v61 = vld [vmem:[%s1 + $0xa4] sm:$0xf]
  %v62 = vld [vmem:[%s1 + $0xa8] sm:$0xff]
  %v63 = vld [vmem:[%s1 + $0xb0] sm:$0xf]
  %v64 = vld [vmem:[%s1 + $0xb4] sm:$0xff]
  %v65 = vld [vmem:[%s1 + $0xbc] sm:$0xf]
  %v98 = vunpack.c.l.b16 %v34
  %v99 = vunpack.c.h.b16 %v34
  %v100 = vunpack.c.l.b16 %v35
  %v101 = vunpack.c.l.b16 %v36
  %v102 = vunpack.c.h.b16 %v36
  %v103 = vunpack.c.l.b16 %v37
  %v104 = vunpack.c.l.b16 %v38
  %v105 = vunpack.c.h.b16 %v38
  %v106 = vunpack.c.l.b16 %v39
  %v107 = vunpack.c.l.b16 %v40
  %v108 = vunpack.c.h.b16 %v40
  %v109 = vunpack.c.l.b16 %v41
  %v110 = vunpack.c.l.b16 %v42
  %v111 = vunpack.c.h.b16 %v42
  %v112 = vunpack.c.l.b16 %v43
  %v113 = vunpack.c.l.b16 %v44
  %v114 = vunpack.c.h.b16 %v44
  %v115 = vunpack.c.l.b16 %v45
  %v116 = vunpack.c.l.b16 %v46
  %v117 = vunpack.c.h.b16 %v46
  %v118 = vunpack.c.l.b16 %v47
  %v119 = vunpack.c.l.b16 %v48
  %v120 = vunpack.c.h.b16 %v48
  %v121 = vunpack.c.l.b16 %v49
  %v122 = vunpack.c.l.b16 %v50
  %v123 = vunpack.c.h.b16 %v50
  %v124 = vunpack.c.l.b16 %v51
  %v125 = vunpack.c.l.b16 %v52
  %v126 = vunpack.c.h.b16 %v52
  %v127 = vunpack.c.l.b16 %v53
  %v128 = vunpack.c.l.b16 %v54
  %v129 = vunpack.c.h.b16 %v54
  %v130 = vunpack.c.l.b16 %v55
  %v131 = vunpack.c.l.b16 %v56
  %v132 = vunpack.c.h.b16 %v56
  %v133 = vunpack.c.l.b16 %v57
  %v134 = vunpack.c.l.b16 %v58
  %v135 = vunpack.c.h.b16 %v58
  %v136 = vunpack.c.l.b16 %v59
  %v137 = vunpack.c.l.b16 %v60
  %v138 = vunpack.c.h.b16 %v60
  %v139 = vunpack.c.l.b16 %v61
  %v140 = vunpack.c.l.b16 %v62
  %v141 = vunpack.c.h.b16 %v62
  %v142 = vunpack.c.l.b16 %v63
  %v143 = vunpack.c.l.b16 %v64
  %v144 = vunpack.c.h.b16 %v64
  %v145 = vunpack.c.l.b16 %v65
  %v146 = vpack.c.b16 %v101, %v98
  %v147 = vpack.c.b16 %v102, %v99
  %v148 = vpack.c.b16 %v103, %v100
  %v149 = vpack.c.b16 %v107, %v104
  %v150 = vpack.c.b16 %v108, %v105
  %v151 = vpack.c.b16 %v109, %v106
  %v152 = vpack.c.b16 %v113, %v110
  %v153 = vpack.c.b16 %v114, %v111
  %v154 = vpack.c.b16 %v115, %v112
  %v155 = vpack.c.b16 %v119, %v116
  %v156 = vpack.c.b16 %v120, %v117
  %v157 = vpack.c.b16 %v121, %v118
  %v158 = vpack.c.b16 %v125, %v122
  %v159 = vpack.c.b16 %v126, %v123
  %v160 = vpack.c.b16 %v127, %v124
  %v161 = vpack.c.b16 %v131, %v128
  %v162 = vpack.c.b16 %v132, %v129
  %v163 = vpack.c.b16 %v133, %v130
  %v164 = vpack.c.b16 %v137, %v134
  %v165 = vpack.c.b16 %v138, %v135
  %v166 = vpack.c.b16 %v139, %v136
  %v167 = vpack.c.b16 %v143, %v140
  %v168 = vpack.c.b16 %v144, %v141
  %v169 = vpack.c.b16 %v145, %v142
  %194 = vmatpush.bf16.msra.mxu0 %v167
  %195 = vmatpush.bf16.msra.mxu0 %v164
  %196 = vmatpush.bf16.msra.mxu0 %v161
  %197 = vmatpush.bf16.msra.mxu0 %v158
  %198 = vmatpush.bf16.msra.mxu0 %v155
  %199 = vmatpush.bf16.msra.mxu0 %v152
  %200 = vmatpush.bf16.msra.mxu0 %v149
  %201 = vmatpush.bf16.msra.mxu0 %v146
  %202 = vmatmul.bf16.gmra.mxu0 %v33
  %v203 = vpop.f32.mrf.mxu0
  %v204 = vadd.f32 0.0, %v203
  %v205 = vpop.f32.mrf.mxu0
  %206 = vdwg.mxu0
  %207 = vmatpush.bf16.msra.mxu0 %v168
  %208 = vmatpush.bf16.msra.mxu0 %v165
  %209 = vmatpush.bf16.msra.mxu0 %v162
  %210 = vmatpush.bf16.msra.mxu0 %v159
  %211 = vmatpush.bf16.msra.mxu0 %v156
  %212 = vmatpush.bf16.msra.mxu0 %v153
  %213 = vmatpush.bf16.msra.mxu0 %v150
  %214 = vmatpush.bf16.msra.mxu0 %v147
  %215 = vmatmul.bf16.gmra.mxu0 %v33
  %v216 = vpop.f32.mrf.mxu0
  %v217 = vadd.f32 0.0, %v216
  %v218 = vpop.f32.mrf.mxu0
  %219 = vdwg.mxu0
  %220 = vmatpush.bf16.msra.mxu0 %v169
  %221 = vmatpush.bf16.msra.mxu0 %v166
  %222 = vmatpush.bf16.msra.mxu0 %v163
  %223 = vmatpush.bf16.msra.mxu0 %v160
  %224 = vmatpush.bf16.msra.mxu0 %v157
  %225 = vmatpush.bf16.msra.mxu0 %v154
  %226 = vmatpush.bf16.msra.mxu0 %v151
  %227 = vmatpush.bf16.msra.mxu0 %v148
  %228 = vmatmul.bf16.gmra.mxu0 %v33
  %v229 = vpop.f32.mrf.mxu0
  %v230 = vadd.f32 0.0, %v229
  %v231 = vpop.f32.mrf.mxu0
  %232 = vdwg.mxu0
  %v233 = vadd.f32 %v30, %v204
  %v234 = vxor.u32 %v233, 2147483648
  %v235 = vmul.f32 %v234, 1.442695
  %v236 = vpow.pop %v235
  %v237 = vadd.f32 %v236, 1.0
  %v238 = vrcp.pop %v237
  %v239 = vmul.f32 %v237, %v238
  %v240 = vsub.f32 1.0, %v239
  %v241 = vmul.f32 %v238, %v240
  %v242 = vadd.f32 %v238, %v241
  %vm243 = vweird.f32 %v237
  %vm244 = vweird.f32 %v238
  %vm245 = vmor %vm243, %vm244
  %v246 = vsel %vm245, %v238, %v242
  %v247 = vand.u32 2147483647, %v237
  %vm248 = vcmp.eq.f32.partialorder %v247, 8.507059e+37
  %v249 = vand.u32 %v237, 2147483648
  %v250 = vor.u32 1.1754944e-38, %v249
  %v251 = vsel %vm248, %v250, %v246
  %v252 = vmul.f32 1.0, %v251
  %v253 = vadd.f32 %v31, %v217
  %v254 = vxor.u32 %v253, 2147483648
  %v255 = vmul.f32 %v254, 1.442695
  %v256 = vpow.pop %v255
  %v257 = vadd.f32 %v256, 1.0
  %v258 = vrcp.pop %v257
  %v259 = vmul.f32 %v257, %v258
  %v260 = vsub.f32 1.0, %v259
  %v261 = vmul.f32 %v258, %v260
  %v262 = vadd.f32 %v258, %v261
  %vm263 = vweird.f32 %v257
  %vm264 = vweird.f32 %v258
  %vm265 = vmor %vm263, %vm264
  %v266 = vsel %vm265, %v258, %v262
  %v267 = vand.u32 2147483647, %v257
  %vm268 = vcmp.eq.f32.partialorder %v267, 8.507059e+37
  %v269 = vand.u32 %v257, 2147483648
  %v270 = vor.u32 1.1754944e-38, %v269
  %v271 = vsel %vm268, %v270, %v266
  %v272 = vmul.f32 1.0, %v271
  %v274 = vperm.slane %v25, 0
  %v276 = vadd.f32 %v230, %v274
  %v277 = vmul.f32 %v252, %v276
  %v278 = vadd.f32 %v32, %v277
  %v279 = vtanh.pop %v278
  %v280 = vsub.f32 1.0, %v272
  %v281 = vmul.f32 %v280, %v279
  %v282 = vmul.f32 %v272, %v26
  %v283 = vadd.f32 %v281, %v282
  %s284 = smul.u32 1, 3
  %s285 = smul.addr %s284, 8
  %s286 = scalar_lea.vmem %s0, %s285
  %v287 = vld [vmem:[%s286] sm:$0xff]
  %v288 = vld [vmem:[%s286 + $0x8] sm:$0xff]
  %v289 = vld [vmem:[%s286 + $0x10] sm:$0xff]
  %v290 = vpack.c.bf16 %v283, %v283
  %291 = vmatpush.bf16.msra.mxu0 %v167
  %292 = vmatpush.bf16.msra.mxu0 %v164
  %293 = vmatpush.bf16.msra.mxu0 %v161
  %294 = vmatpush.bf16.msra.mxu0 %v158
  %295 = vmatpush.bf16.msra.mxu0 %v155
  %296 = vmatpush.bf16.msra.mxu0 %v152
  %297 = vmatpush.bf16.msra.mxu0 %v149
  %298 = vmatpush.bf16.msra.mxu0 %v146
  %299 = vmatmul.bf16.gmra.mxu0 %v290
  %v300 = vpop.f32.mrf.mxu0
  %v301 = vadd.f32 0.0, %v300
  %v302 = vpop.f32.mrf.mxu0
  %303 = vdwg.mxu0
  %304 = vmatpush.bf16.msra.mxu0 %v168
  %305 = vmatpush.bf16.msra.mxu0 %v165
  %306 = vmatpush.bf16.msra.mxu0 %v162
  %307 = vmatpush.bf16.msra.mxu0 %v159
  %308 = vmatpush.bf16.msra.mxu0 %v156
  %309 = vmatpush.bf16.msra.mxu0 %v153
  %310 = vmatpush.bf16.msra.mxu0 %v150
  %311 = vmatpush.bf16.msra.mxu0 %v147
  %312 = vmatmul.bf16.gmra.mxu0 %v290
  %v313 = vpop.f32.mrf.mxu0
  %v314 = vadd.f32 0.0, %v313
  %v315 = vpop.f32.mrf.mxu0
  %316 = vdwg.mxu0
  %317 = vmatpush.bf16.msra.mxu0 %v169
  %318 = vmatpush.bf16.msra.mxu0 %v166
  %319 = vmatpush.bf16.msra.mxu0 %v163
  %320 = vmatpush.bf16.msra.mxu0 %v160
  %321 = vmatpush.bf16.msra.mxu0 %v157
  %322 = vmatpush.bf16.msra.mxu0 %v154
  %323 = vmatpush.bf16.msra.mxu0 %v151
  %324 = vmatpush.bf16.msra.mxu0 %v148
  %325 = vmatmul.bf16.gmra.mxu0 %v290
  %v326 = vpop.f32.mrf.mxu0
  %v327 = vadd.f32 0.0, %v326
  %v328 = vpop.f32.mrf.mxu0
  %329 = vdwg.mxu0
  %v330 = vadd.f32 %v287, %v301
  %v331 = vxor.u32 %v330, 2147483648
  %v332 = vmul.f32 %v331, 1.442695
  %v333 = vpow.pop %v332
  %v334 = vadd.f32 %v333, 1.0
  %v335 = vrcp.pop %v334
  %v336 = vmul.f32 %v334, %v335
  %v337 = vsub.f32 1.0, %v336
  %v338 = vmul.f32 %v335, %v337
  %v339 = vadd.f32 %v335, %v338
  %vm340 = vweird.f32 %v334
  %vm341 = vweird.f32 %v335
  %vm342 = vmor %vm340, %vm341
  %v343 = vsel %vm342, %v335, %v339
  %v344 = vand.u32 2147483647, %v334
  %vm345 = vcmp.eq.f32.partialorder %v344, 8.507059e+37
  %v346 = vand.u32 %v334, 2147483648
  %v347 = vor.u32 1.1754944e-38, %v346
  %v348 = vsel %vm345, %v347, %v343
  %v349 = vmul.f32 1.0, %v348
  %v350 = vadd.f32 %v288, %v314
  %v351 = vxor.u32 %v350, 2147483648
  %v352 = vmul.f32 %v351, 1.442695
  %v353 = vpow.pop %v352
  %v354 = vadd.f32 %v353, 1.0
  %v355 = vrcp.pop %v354
  %v356 = vmul.f32 %v354, %v355
  %v357 = vsub.f32 1.0, %v356
  %v358 = vmul.f32 %v355, %v357
  %v359 = vadd.f32 %v355, %v358
  %vm360 = vweird.f32 %v354
  %vm361 = vweird.f32 %v355
  %vm362 = vmor %vm360, %vm361
  %v363 = vsel %vm362, %v355, %v359
  %v364 = vand.u32 2147483647, %v354
  %vm365 = vcmp.eq.f32.partialorder %v364, 8.507059e+37
  %v366 = vand.u32 %v354, 2147483648
  %v367 = vor.u32 1.1754944e-38, %v366
  %v368 = vsel %vm365, %v367, %v363
  %v369 = vmul.f32 1.0, %v368
  %v370 = vadd.f32 %v327, %v274
  %v371 = vmul.f32 %v349, %v370
  %v372 = vadd.f32 %v289, %v371
  %v373 = vtanh.pop %v372
  %v374 = vsub.f32 1.0, %v369
  %v375 = vmul.f32 %v374, %v373
  %v376 = vmul.f32 %v369, %v283
  %v377 = vadd.f32 %v375, %v376
  %s378 = smul.u32 2, 3
  %s379 = smul.addr %s378, 8
  %s380 = scalar_lea.vmem %s0, %s379
  %v381 = vld [vmem:[%s380] sm:$0xff]
  %v382 = vld [vmem:[%s380 + $0x8] sm:$0xff]
  %v383 = vld [vmem:[%s380 + $0x10] sm:$0xff]
  %v384 = vpack.c.bf16 %v377, %v377
  %385 = vmatpush.bf16.msra.mxu0 %v167
  %386 = vmatpush.bf16.msra.mxu0 %v164
  %387 = vmatpush.bf16.msra.mxu0 %v161
  %388 = vmatpush.bf16.msra.mxu0 %v158
  %389 = vmatpush.bf16.msra.mxu0 %v155
  %390 = vmatpush.bf16.msra.mxu0 %v152
  %391 = vmatpush.bf16.msra.mxu0 %v149
  %392 = vmatpush.bf16.msra.mxu0 %v146
  %393 = vmatmul.bf16.gmra.mxu0 %v384
  %v394 = vpop.f32.mrf.mxu0
  %v395 = vadd.f32 0.0, %v394
  %v396 = vpop.f32.mrf.mxu0
  %397 = vdwg.mxu0
  %398 = vmatpush.bf16.msra.mxu0 %v168
  %399 = vmatpush.bf16.msra.mxu0 %v165
  %400 = vmatpush.bf16.msra.mxu0 %v162
  %401 = vmatpush.bf16.msra.mxu0 %v159
  %402 = vmatpush.bf16.msra.mxu0 %v156
  %403 = vmatpush.bf16.msra.mxu0 %v153
  %404 = vmatpush.bf16.msra.mxu0 %v150
  %405 = vmatpush.bf16.msra.mxu0 %v147
  %406 = vmatmul.bf16.gmra.mxu0 %v384
  %v407 = vpop.f32.mrf.mxu0
  %v408 = vadd.f32 0.0, %v407
  %v409 = vpop.f32.mrf.mxu0
  %410 = vdwg.mxu0
  %411 = vmatpush.bf16.msra.mxu0 %v169
  %412 = vmatpush.bf16.msra.mxu0 %v166
  %413 = vmatpush.bf16.msra.mxu0 %v163
  %414 = vmatpush.bf16.msra.mxu0 %v160
  %415 = vmatpush.bf16.msra.mxu0 %v157
  %416 = vmatpush.bf16.msra.mxu0 %v154
  %417 = vmatpush.bf16.msra.mxu0 %v151
  %418 = vmatpush.bf16.msra.mxu0 %v148
  %419 = vmatmul.bf16.gmra.mxu0 %v384
  %v420 = vpop.f32.mrf.mxu0
  %v421 = vadd.f32 0.0, %v420
  %v422 = vpop.f32.mrf.mxu0
  %423 = vdwg.mxu0
  %v424 = vadd.f32 %v381, %v395
  %v425 = vxor.u32 %v424, 2147483648
  %v426 = vmul.f32 %v425, 1.442695
  %v427 = vpow.pop %v426
  %v428 = vadd.f32 %v427, 1.0
  %v429 = vrcp.pop %v428
  %v430 = vmul.f32 %v428, %v429
  %v431 = vsub.f32 1.0, %v430
  %v432 = vmul.f32 %v429, %v431
  %v433 = vadd.f32 %v429, %v432
  %vm434 = vweird.f32 %v428
  %vm435 = vweird.f32 %v429
  %vm436 = vmor %vm434, %vm435
  %v437 = vsel %vm436, %v429, %v433
  %v438 = vand.u32 2147483647, %v428
  %vm439 = vcmp.eq.f32.partialorder %v438, 8.507059e+37
  %v440 = vand.u32 %v428, 2147483648
  %v441 = vor.u32 1.1754944e-38, %v440
  %v442 = vsel %vm439, %v441, %v437
  %v443 = vmul.f32 1.0, %v442
  %v444 = vadd.f32 %v382, %v408
  %v445 = vxor.u32 %v444, 2147483648
  %v446 = vmul.f32 %v445, 1.442695
  %v447 = vpow.pop %v446
  %v448 = vadd.f32 %v447, 1.0
  %v449 = vrcp.pop %v448
  %v450 = vmul.f32 %v448, %v449
  %v451 = vsub.f32 1.0, %v450
  %v452 = vmul.f32 %v449, %v451
  %v453 = vadd.f32 %v449, %v452
  %vm454 = vweird.f32 %v448
  %vm455 = vweird.f32 %v449
  %vm456 = vmor %vm454, %vm455
  %v457 = vsel %vm456, %v449, %v453
  %v458 = vand.u32 2147483647, %v448
  %vm459 = vcmp.eq.f32.partialorder %v458, 8.507059e+37
  %v460 = vand.u32 %v448, 2147483648
  %v461 = vor.u32 1.1754944e-38, %v460
  %v462 = vsel %vm459, %v461, %v457
  %v463 = vmul.f32 1.0, %v462
  %v464 = vadd.f32 %v421, %v274
  %v465 = vmul.f32 %v443, %v464
  %v466 = vadd.f32 %v383, %v465
  %v467 = vtanh.pop %v466
  %v468 = vsub.f32 1.0, %v463
  %v469 = vmul.f32 %v468, %v467
  %v470 = vmul.f32 %v463, %v377
  %v471 = vadd.f32 %v469, %v470
  %s472 = smul.u32 3, 3
  %s473 = smul.addr %s472, 8
  %s474 = scalar_lea.vmem %s0, %s473
  %v475 = vld [vmem:[%s474] sm:$0xff]
  %v476 = vld [vmem:[%s474 + $0x8] sm:$0xff]
  %v477 = vld [vmem:[%s474 + $0x10] sm:$0xff]
  %v478 = vpack.c.bf16 %v471, %v471
  %479 = vmatpush.bf16.msra.mxu0 %v167
  %480 = vmatpush.bf16.msra.mxu0 %v164
  %481 = vmatpush.bf16.msra.mxu0 %v161
  %482 = vmatpush.bf16.msra.mxu0 %v158
  %483 = vmatpush.bf16.msra.mxu0 %v155
  %484 = vmatpush.bf16.msra.mxu0 %v152
  %485 = vmatpush.bf16.msra.mxu0 %v149
  %486 = vmatpush.bf16.msra.mxu0 %v146
  %487 = vmatmul.bf16.gmra.mxu0 %v478
  %v488 = vpop.f32.mrf.mxu0
  %v489 = vadd.f32 0.0, %v488
  %v490 = vpop.f32.mrf.mxu0
  %491 = vdwg.mxu0
  %492 = vmatpush.bf16.msra.mxu0 %v168
  %493 = vmatpush.bf16.msra.mxu0 %v165
  %494 = vmatpush.bf16.msra.mxu0 %v162
  %495 = vmatpush.bf16.msra.mxu0 %v159
  %496 = vmatpush.bf16.msra.mxu0 %v156
  %497 = vmatpush.bf16.msra.mxu0 %v153
  %498 = vmatpush.bf16.msra.mxu0 %v150
  %499 = vmatpush.bf16.msra.mxu0 %v147
  %500 = vmatmul.bf16.gmra.mxu0 %v478
  %v501 = vpop.f32.mrf.mxu0
  %v502 = vadd.f32 0.0, %v501
  %v503 = vpop.f32.mrf.mxu0
  %504 = vdwg.mxu0
  %505 = vmatpush.bf16.msra.mxu0 %v169
  %506 = vmatpush.bf16.msra.mxu0 %v166
  %507 = vmatpush.bf16.msra.mxu0 %v163
  %508 = vmatpush.bf16.msra.mxu0 %v160
  %509 = vmatpush.bf16.msra.mxu0 %v157
  %510 = vmatpush.bf16.msra.mxu0 %v154
  %511 = vmatpush.bf16.msra.mxu0 %v151
  %512 = vmatpush.bf16.msra.mxu0 %v148
  %513 = vmatmul.bf16.gmra.mxu0 %v478
  %v514 = vpop.f32.mrf.mxu0
  %v515 = vadd.f32 0.0, %v514
  %v516 = vpop.f32.mrf.mxu0
  %517 = vdwg.mxu0
  %v518 = vadd.f32 %v475, %v489
  %v519 = vxor.u32 %v518, 2147483648
  %v520 = vmul.f32 %v519, 1.442695
  %v521 = vpow.pop %v520
  %v522 = vadd.f32 %v521, 1.0
  %v523 = vrcp.pop %v522
  %v524 = vmul.f32 %v522, %v523
  %v525 = vsub.f32 1.0, %v524
  %v526 = vmul.f32 %v523, %v525
  %v527 = vadd.f32 %v523, %v526
  %vm528 = vweird.f32 %v522
  %vm529 = vweird.f32 %v523
  %vm530 = vmor %vm528, %vm529
  %v531 = vsel %vm530, %v523, %v527
  %v532 = vand.u32 2147483647, %v522
  %vm533 = vcmp.eq.f32.partialorder %v532, 8.507059e+37
  %v534 = vand.u32 %v522, 2147483648
  %v535 = vor.u32 1.1754944e-38, %v534
  %v536 = vsel %vm533, %v535, %v531
  %v537 = vmul.f32 1.0, %v536
  %v538 = vadd.f32 %v476, %v502
  %v539 = vxor.u32 %v538, 2147483648
  %v540 = vmul.f32 %v539, 1.442695
  %v541 = vpow.pop %v540
  %v542 = vadd.f32 %v541, 1.0
  %v543 = vrcp.pop %v542
  %v544 = vmul.f32 %v542, %v543
  %v545 = vsub.f32 1.0, %v544
  %v546 = vmul.f32 %v543, %v545
  %v547 = vadd.f32 %v543, %v546
  %vm548 = vweird.f32 %v542
  %vm549 = vweird.f32 %v543
  %vm550 = vmor %vm548, %vm549
  %v551 = vsel %vm550, %v543, %v547
  %v552 = vand.u32 2147483647, %v542
  %vm553 = vcmp.eq.f32.partialorder %v552, 8.507059e+37
  %v554 = vand.u32 %v542, 2147483648
  %v555 = vor.u32 1.1754944e-38, %v554
  %v556 = vsel %vm553, %v555, %v551
  %v557 = vmul.f32 1.0, %v556
  %v558 = vadd.f32 %v515, %v274
  %v559 = vmul.f32 %v537, %v558
  %v560 = vadd.f32 %v477, %v559
  %v561 = vtanh.pop %v560
  %v562 = vsub.f32 1.0, %v557
  %v563 = vmul.f32 %v562, %v561
  %v564 = vmul.f32 %v557, %v471
  %v565 = vadd.f32 %v563, %v564
  %s566 = smul.u32 4, 3
  %s567 = smul.addr %s566, 8
  %s568 = scalar_lea.vmem %s0, %s567
  %v569 = vld [vmem:[%s568] sm:$0xff]
  %v570 = vld [vmem:[%s568 + $0x8] sm:$0xff]
  %v571 = vld [vmem:[%s568 + $0x10] sm:$0xff]
  %v572 = vpack.c.bf16 %v565, %v565
  %573 = vmatpush.bf16.msra.mxu0 %v167
  %574 = vmatpush.bf16.msra.mxu0 %v164
  %575 = vmatpush.bf16.msra.mxu0 %v161
  %576 = vmatpush.bf16.msra.mxu0 %v158
  %577 = vmatpush.bf16.msra.mxu0 %v155
  %578 = vmatpush.bf16.msra.mxu0 %v152
  %579 = vmatpush.bf16.msra.mxu0 %v149
  %580 = vmatpush.bf16.msra.mxu0 %v146
  %581 = vmatmul.bf16.gmra.mxu0 %v572
  %v582 = vpop.f32.mrf.mxu0
  %v583 = vadd.f32 0.0, %v582
  %v584 = vpop.f32.mrf.mxu0
  %585 = vdwg.mxu0
  %586 = vmatpush.bf16.msra.mxu0 %v168
  %587 = vmatpush.bf16.msra.mxu0 %v165
  %588 = vmatpush.bf16.msra.mxu0 %v162
  %589 = vmatpush.bf16.msra.mxu0 %v159
  %590 = vmatpush.bf16.msra.mxu0 %v156
  %591 = vmatpush.bf16.msra.mxu0 %v153
  %592 = vmatpush.bf16.msra.mxu0 %v150
  %593 = vmatpush.bf16.msra.mxu0 %v147
  %594 = vmatmul.bf16.gmra.mxu0 %v572
  %v595 = vpop.f32.mrf.mxu0
  %v596 = vadd.f32 0.0, %v595
  %v597 = vpop.f32.mrf.mxu0
  %598 = vdwg.mxu0
  %599 = vmatpush.bf16.msra.mxu0 %v169
  %600 = vmatpush.bf16.msra.mxu0 %v166
  %601 = vmatpush.bf16.msra.mxu0 %v163
  %602 = vmatpush.bf16.msra.mxu0 %v160
  %603 = vmatpush.bf16.msra.mxu0 %v157
  %604 = vmatpush.bf16.msra.mxu0 %v154
  %605 = vmatpush.bf16.msra.mxu0 %v151
  %606 = vmatpush.bf16.msra.mxu0 %v148
  %607 = vmatmul.bf16.gmra.mxu0 %v572
  %v608 = vpop.f32.mrf.mxu0
  %v609 = vadd.f32 0.0, %v608
  %v610 = vpop.f32.mrf.mxu0
  %611 = vdwg.mxu0
  %v612 = vadd.f32 %v569, %v583
  %v613 = vxor.u32 %v612, 2147483648
  %v614 = vmul.f32 %v613, 1.442695
  %v615 = vpow.pop %v614
  %v616 = vadd.f32 %v615, 1.0
  %v617 = vrcp.pop %v616
  %v618 = vmul.f32 %v616, %v617
  %v619 = vsub.f32 1.0, %v618
  %v620 = vmul.f32 %v617, %v619
  %v621 = vadd.f32 %v617, %v620
  %vm622 = vweird.f32 %v616
  %vm623 = vweird.f32 %v617
  %vm624 = vmor %vm622, %vm623
  %v625 = vsel %vm624, %v617, %v621
  %v626 = vand.u32 2147483647, %v616
  %vm627 = vcmp.eq.f32.partialorder %v626, 8.507059e+37
  %v628 = vand.u32 %v616, 2147483648
  %v629 = vor.u32 1.1754944e-38, %v628
  %v630 = vsel %vm627, %v629, %v625
  %v631 = vmul.f32 1.0, %v630
  %v632 = vadd.f32 %v570, %v596
  %v633 = vxor.u32 %v632, 2147483648
  %v634 = vmul.f32 %v633, 1.442695
  %v635 = vpow.pop %v634
  %v636 = vadd.f32 %v635, 1.0
  %v637 = vrcp.pop %v636
  %v638 = vmul.f32 %v636, %v637
  %v639 = vsub.f32 1.0, %v638
  %v640 = vmul.f32 %v637, %v639
  %v641 = vadd.f32 %v637, %v640
  %vm642 = vweird.f32 %v636
  %vm643 = vweird.f32 %v637
  %vm644 = vmor %vm642, %vm643
  %v645 = vsel %vm644, %v637, %v641
  %v646 = vand.u32 2147483647, %v636
  %vm647 = vcmp.eq.f32.partialorder %v646, 8.507059e+37
  %v648 = vand.u32 %v636, 2147483648
  %v649 = vor.u32 1.1754944e-38, %v648
  %v650 = vsel %vm647, %v649, %v645
  %v651 = vmul.f32 1.0, %v650
  %v652 = vadd.f32 %v609, %v274
  %v653 = vmul.f32 %v631, %v652
  %v654 = vadd.f32 %v571, %v653
  %v655 = vtanh.pop %v654
  %v656 = vsub.f32 1.0, %v651
  %v657 = vmul.f32 %v656, %v655
  %v658 = vmul.f32 %v651, %v565
  %v659 = vadd.f32 %v657, %v658
  %s660 = smul.u32 5, 3
  %s661 = smul.addr %s660, 8
  %s662 = scalar_lea.vmem %s0, %s661
  %v663 = vld [vmem:[%s662] sm:$0xff]
  %v664 = vld [vmem:[%s662 + $0x8] sm:$0xff]
  %v665 = vld [vmem:[%s662 + $0x10] sm:$0xff]
  %v666 = vpack.c.bf16 %v659, %v659
  %667 = vmatpush.bf16.msra.mxu0 %v167
  %668 = vmatpush.bf16.msra.mxu0 %v164
  %669 = vmatpush.bf16.msra.mxu0 %v161
  %670 = vmatpush.bf16.msra.mxu0 %v158
  %671 = vmatpush.bf16.msra.mxu0 %v155
  %672 = vmatpush.bf16.msra.mxu0 %v152
  %673 = vmatpush.bf16.msra.mxu0 %v149
  %674 = vmatpush.bf16.msra.mxu0 %v146
  %675 = vmatmul.bf16.gmra.mxu0 %v666
  %v676 = vpop.f32.mrf.mxu0
  %v677 = vadd.f32 0.0, %v676
  %v678 = vpop.f32.mrf.mxu0
  %679 = vdwg.mxu0
  %680 = vmatpush.bf16.msra.mxu0 %v168
  %681 = vmatpush.bf16.msra.mxu0 %v165
  %682 = vmatpush.bf16.msra.mxu0 %v162
  %683 = vmatpush.bf16.msra.mxu0 %v159
  %684 = vmatpush.bf16.msra.mxu0 %v156
  %685 = vmatpush.bf16.msra.mxu0 %v153
  %686 = vmatpush.bf16.msra.mxu0 %v150
  %687 = vmatpush.bf16.msra.mxu0 %v147
  %688 = vmatmul.bf16.gmra.mxu0 %v666
  %v689 = vpop.f32.mrf.mxu0
  %v690 = vadd.f32 0.0, %v689
  %v691 = vpop.f32.mrf.mxu0
  %692 = vdwg.mxu0
  %693 = vmatpush.bf16.msra.mxu0 %v169
  %694 = vmatpush.bf16.msra.mxu0 %v166
  %695 = vmatpush.bf16.msra.mxu0 %v163
  %696 = vmatpush.bf16.msra.mxu0 %v160
  %697 = vmatpush.bf16.msra.mxu0 %v157
  %698 = vmatpush.bf16.msra.mxu0 %v154
  %699 = vmatpush.bf16.msra.mxu0 %v151
  %700 = vmatpush.bf16.msra.mxu0 %v148
  %701 = vmatmul.bf16.gmra.mxu0 %v666
  %v702 = vpop.f32.mrf.mxu0
  %v703 = vadd.f32 0.0, %v702
  %v704 = vpop.f32.mrf.mxu0
  %705 = vdwg.mxu0
  %v706 = vadd.f32 %v663, %v677
  %v707 = vxor.u32 %v706, 2147483648
  %v708 = vmul.f32 %v707, 1.442695
  %v709 = vpow.pop %v708
  %v710 = vadd.f32 %v709, 1.0
  %v711 = vrcp.pop %v710
  %v712 = vmul.f32 %v710, %v711
  %v713 = vsub.f32 1.0, %v712
  %v714 = vmul.f32 %v711, %v713
  %v715 = vadd.f32 %v711, %v714
  %vm716 = vweird.f32 %v710
  %vm717 = vweird.f32 %v711
  %vm718 = vmor %vm716, %vm717
  %v719 = vsel %vm718, %v711, %v715
  %v720 = vand.u32 2147483647, %v710
  %vm721 = vcmp.eq.f32.partialorder %v720, 8.507059e+37
  %v722 = vand.u32 %v710, 2147483648
  %v723 = vor.u32 1.1754944e-38, %v722
  %v724 = vsel %vm721, %v723, %v719
  %v725 = vmul.f32 1.0, %v724
  %v726 = vadd.f32 %v664, %v690
  %v727 = vxor.u32 %v726, 2147483648
  %v728 = vmul.f32 %v727, 1.442695
  %v729 = vpow.pop %v728
  %v730 = vadd.f32 %v729, 1.0
  %v731 = vrcp.pop %v730
  %v732 = vmul.f32 %v730, %v731
  %v733 = vsub.f32 1.0, %v732
  %v734 = vmul.f32 %v731, %v733
  %v735 = vadd.f32 %v731, %v734
  %vm736 = vweird.f32 %v730
  %vm737 = vweird.f32 %v731
  %vm738 = vmor %vm736, %vm737
  %v739 = vsel %vm738, %v731, %v735
  %v740 = vand.u32 2147483647, %v730
  %vm741 = vcmp.eq.f32.partialorder %v740, 8.507059e+37
  %v742 = vand.u32 %v730, 2147483648
  %v743 = vor.u32 1.1754944e-38, %v742
  %v744 = vsel %vm741, %v743, %v739
  %v745 = vmul.f32 1.0, %v744
  %v746 = vadd.f32 %v703, %v274
  %v747 = vmul.f32 %v725, %v746
  %v748 = vadd.f32 %v665, %v747
  %v749 = vtanh.pop %v748
  %v750 = vsub.f32 1.0, %v745
  %v751 = vmul.f32 %v750, %v749
  %v752 = vmul.f32 %v745, %v659
  %v753 = vadd.f32 %v751, %v752
  %s754 = smul.u32 6, 3
  %s755 = smul.addr %s754, 8
  %s756 = scalar_lea.vmem %s0, %s755
  %v757 = vld [vmem:[%s756] sm:$0xff]
  %v758 = vld [vmem:[%s756 + $0x8] sm:$0xff]
  %v759 = vld [vmem:[%s756 + $0x10] sm:$0xff]
  %v760 = vpack.c.bf16 %v753, %v753
  %761 = vmatpush.bf16.msra.mxu0 %v167
  %762 = vmatpush.bf16.msra.mxu0 %v164
  %763 = vmatpush.bf16.msra.mxu0 %v161
  %764 = vmatpush.bf16.msra.mxu0 %v158
  %765 = vmatpush.bf16.msra.mxu0 %v155
  %766 = vmatpush.bf16.msra.mxu0 %v152
  %767 = vmatpush.bf16.msra.mxu0 %v149
  %768 = vmatpush.bf16.msra.mxu0 %v146
  %769 = vmatmul.bf16.gmra.mxu0 %v760
  %v770 = vpop.f32.mrf.mxu0
  %v771 = vadd.f32 0.0, %v770
  %v772 = vpop.f32.mrf.mxu0
  %773 = vdwg.mxu0
  %774 = vmatpush.bf16.msra.mxu0 %v168
  %775 = vmatpush.bf16.msra.mxu0 %v165
  %776 = vmatpush.bf16.msra.mxu0 %v162
  %777 = vmatpush.bf16.msra.mxu0 %v159
  %778 = vmatpush.bf16.msra.mxu0 %v156
  %779 = vmatpush.bf16.msra.mxu0 %v153
  %780 = vmatpush.bf16.msra.mxu0 %v150
  %781 = vmatpush.bf16.msra.mxu0 %v147
  %782 = vmatmul.bf16.gmra.mxu0 %v760
  %v783 = vpop.f32.mrf.mxu0
  %v784 = vadd.f32 0.0, %v783
  %v785 = vpop.f32.mrf.mxu0
  %786 = vdwg.mxu0
  %787 = vmatpush.bf16.msra.mxu0 %v169
  %788 = vmatpush.bf16.msra.mxu0 %v166
  %789 = vmatpush.bf16.msra.mxu0 %v163
  %790 = vmatpush.bf16.msra.mxu0 %v160
  %791 = vmatpush.bf16.msra.mxu0 %v157
  %792 = vmatpush.bf16.msra.mxu0 %v154
  %793 = vmatpush.bf16.msra.mxu0 %v151
  %794 = vmatpush.bf16.msra.mxu0 %v148
  %795 = vmatmul.bf16.gmra.mxu0 %v760
  %v796 = vpop.f32.mrf.mxu0
  %v797 = vadd.f32 0.0, %v796
  %v798 = vpop.f32.mrf.mxu0
  %799 = vdwg.mxu0
  %v800 = vadd.f32 %v757, %v771
  %v801 = vxor.u32 %v800, 2147483648
  %v802 = vmul.f32 %v801, 1.442695
  %v803 = vpow.pop %v802
  %v804 = vadd.f32 %v803, 1.0
  %v805 = vrcp.pop %v804
  %v806 = vmul.f32 %v804, %v805
  %v807 = vsub.f32 1.0, %v806
  %v808 = vmul.f32 %v805, %v807
  %v809 = vadd.f32 %v805, %v808
  %vm810 = vweird.f32 %v804
  %vm811 = vweird.f32 %v805
  %vm812 = vmor %vm810, %vm811
  %v813 = vsel %vm812, %v805, %v809
  %v814 = vand.u32 2147483647, %v804
  %vm815 = vcmp.eq.f32.partialorder %v814, 8.507059e+37
  %v816 = vand.u32 %v804, 2147483648
  %v817 = vor.u32 1.1754944e-38, %v816
  %v818 = vsel %vm815, %v817, %v813
  %v819 = vmul.f32 1.0, %v818
  %v820 = vadd.f32 %v758, %v784
  %v821 = vxor.u32 %v820, 2147483648
  %v822 = vmul.f32 %v821, 1.442695
  %v823 = vpow.pop %v822
  %v824 = vadd.f32 %v823, 1.0
  %v825 = vrcp.pop %v824
  %v826 = vmul.f32 %v824, %v825
  %v827 = vsub.f32 1.0, %v826
  %v828 = vmul.f32 %v825, %v827
  %v829 = vadd.f32 %v825, %v828
  %vm830 = vweird.f32 %v824
  %vm831 = vweird.f32 %v825
  %vm832 = vmor %vm830, %vm831
  %v833 = vsel %vm832, %v825, %v829
  %v834 = vand.u32 2147483647, %v824
  %vm835 = vcmp.eq.f32.partialorder %v834, 8.507059e+37
  %v836 = vand.u32 %v824, 2147483648
  %v837 = vor.u32 1.1754944e-38, %v836
  %v838 = vsel %vm835, %v837, %v833
  %v839 = vmul.f32 1.0, %v838
  %v840 = vadd.f32 %v797, %v274
  %v841 = vmul.f32 %v819, %v840
  %v842 = vadd.f32 %v759, %v841
  %v843 = vtanh.pop %v842
  %v844 = vsub.f32 1.0, %v839
  %v845 = vmul.f32 %v844, %v843
  %v846 = vmul.f32 %v839, %v753
  %v847 = vadd.f32 %v845, %v846
  %s848 = smul.u32 7, 3
  %s849 = smul.addr %s848, 8
  %s850 = scalar_lea.vmem %s0, %s849
  %v851 = vld [vmem:[%s850] sm:$0xff]
  %v852 = vld [vmem:[%s850 + $0x8] sm:$0xff]
  %v853 = vld [vmem:[%s850 + $0x10] sm:$0xff]
  %v854 = vpack.c.bf16 %v847, %v847
  %855 = vmatpush.bf16.msra.mxu0 %v167
  %856 = vmatpush.bf16.msra.mxu0 %v164
  %857 = vmatpush.bf16.msra.mxu0 %v161
  %858 = vmatpush.bf16.msra.mxu0 %v158
  %859 = vmatpush.bf16.msra.mxu0 %v155
  %860 = vmatpush.bf16.msra.mxu0 %v152
  %861 = vmatpush.bf16.msra.mxu0 %v149
  %862 = vmatpush.bf16.msra.mxu0 %v146
  %863 = vmatmul.bf16.gmra.mxu0 %v854
  %v864 = vpop.f32.mrf.mxu0
  %v865 = vadd.f32 0.0, %v864
  %v866 = vpop.f32.mrf.mxu0
  %867 = vdwg.mxu0
  %868 = vmatpush.bf16.msra.mxu0 %v168
  %869 = vmatpush.bf16.msra.mxu0 %v165
  %870 = vmatpush.bf16.msra.mxu0 %v162
  %871 = vmatpush.bf16.msra.mxu0 %v159
  %872 = vmatpush.bf16.msra.mxu0 %v156
  %873 = vmatpush.bf16.msra.mxu0 %v153
  %874 = vmatpush.bf16.msra.mxu0 %v150
  %875 = vmatpush.bf16.msra.mxu0 %v147
  %876 = vmatmul.bf16.gmra.mxu0 %v854
  %v877 = vpop.f32.mrf.mxu0
  %v878 = vadd.f32 0.0, %v877
  %v879 = vpop.f32.mrf.mxu0
  %880 = vdwg.mxu0
  %881 = vmatpush.bf16.msra.mxu0 %v169
  %882 = vmatpush.bf16.msra.mxu0 %v166
  %883 = vmatpush.bf16.msra.mxu0 %v163
  %884 = vmatpush.bf16.msra.mxu0 %v160
  %885 = vmatpush.bf16.msra.mxu0 %v157
  %886 = vmatpush.bf16.msra.mxu0 %v154
  %887 = vmatpush.bf16.msra.mxu0 %v151
  %888 = vmatpush.bf16.msra.mxu0 %v148
  %889 = vmatmul.bf16.gmra.mxu0 %v854
  %v890 = vpop.f32.mrf.mxu0
  %v891 = vadd.f32 0.0, %v890
  %v892 = vpop.f32.mrf.mxu0
  %893 = vdwg.mxu0
  %v894 = vadd.f32 %v851, %v865
  %v895 = vxor.u32 %v894, 2147483648
  %v896 = vmul.f32 %v895, 1.442695
  %v897 = vpow.pop %v896
  %v898 = vadd.f32 %v897, 1.0
  %v899 = vrcp.pop %v898
  %v900 = vmul.f32 %v898, %v899
  %v901 = vsub.f32 1.0, %v900
  %v902 = vmul.f32 %v899, %v901
  %v903 = vadd.f32 %v899, %v902
  %vm904 = vweird.f32 %v898
  %vm905 = vweird.f32 %v899
  %vm906 = vmor %vm904, %vm905
  %v907 = vsel %vm906, %v899, %v903
  %v908 = vand.u32 2147483647, %v898
  %vm909 = vcmp.eq.f32.partialorder %v908, 8.507059e+37
  %v910 = vand.u32 %v898, 2147483648
  %v911 = vor.u32 1.1754944e-38, %v910
  %v912 = vsel %vm909, %v911, %v907
  %v913 = vmul.f32 1.0, %v912
  %v914 = vadd.f32 %v852, %v878
  %v915 = vxor.u32 %v914, 2147483648
  %v916 = vmul.f32 %v915, 1.442695
  %v917 = vpow.pop %v916
  %v918 = vadd.f32 %v917, 1.0
  %v919 = vrcp.pop %v918
  %v920 = vmul.f32 %v918, %v919
  %v921 = vsub.f32 1.0, %v920
  %v922 = vmul.f32 %v919, %v921
  %v923 = vadd.f32 %v919, %v922
  %vm924 = vweird.f32 %v918
  %vm925 = vweird.f32 %v919
  %vm926 = vmor %vm924, %vm925
  %v927 = vsel %vm926, %v919, %v923
  %v928 = vand.u32 2147483647, %v918
  %vm929 = vcmp.eq.f32.partialorder %v928, 8.507059e+37
  %v930 = vand.u32 %v918, 2147483648
  %v931 = vor.u32 1.1754944e-38, %v930
  %v932 = vsel %vm929, %v931, %v927
  %v933 = vmul.f32 1.0, %v932
  %v934 = vadd.f32 %v891, %v274
  %v935 = vmul.f32 %v913, %v934
  %v936 = vadd.f32 %v853, %v935
  %v937 = vtanh.pop %v936
  %v938 = vsub.f32 1.0, %v933
  %v939 = vmul.f32 %v938, %v937
  %v940 = vmul.f32 %v933, %v847
  %v941 = vadd.f32 %v939, %v940
  %942 = vst [vmem:[#allocation2] sm:$0xff] %v941
  // Predicated region
  $region26: #{rnn_classifier_forward.1} parent=0 // pred_check
    %p943 = pneg %p20
  $region27: #{rnn_classifier_forward.1} parent=0 // pred_check_branch
    %945 = sbr.rel (%p943) target = $region29
  $region28: #{rnn_classifier_forward.1} parent=0 // pred_region
    %v946 = vld [vmem:[#allocation2] sm:$0xff]
    %v947 = vpack.c.bf16 %v946, %v946
    %v948 = vld [vmem:[%s3] sm:$0xf]
    %v949 = vld [vmem:[%s3 + $0x4] sm:$0xf]
    %v950 = vld [vmem:[%s3 + $0x8] sm:$0xf]
    %v951 = vld [vmem:[%s3 + $0xc] sm:$0xf]
    %v952 = vld [vmem:[%s3 + $0x10] sm:$0xf]
    %v953 = vld [vmem:[%s3 + $0x14] sm:$0xf]
    %v954 = vld [vmem:[%s3 + $0x18] sm:$0xf]
    %v955 = vld [vmem:[%s3 + $0x1c] sm:$0xf]
    %v956 = vld [vmem:[%s3 + $0x20] sm:$0xf]
    %v957 = vld [vmem:[%s3 + $0x24] sm:$0xf]
    %v958 = vld [vmem:[%s3 + $0x28] sm:$0xf]
    %v959 = vld [vmem:[%s3 + $0x2c] sm:$0xf]
    %v960 = vld [vmem:[%s3 + $0x30] sm:$0xf]
    %v961 = vld [vmem:[%s3 + $0x34] sm:$0xf]
    %v962 = vld [vmem:[%s3 + $0x38] sm:$0xf]
    %v963 = vld [vmem:[%s3 + $0x3c] sm:$0xf]
    %v964 = vld [vmem:[%s4] sm:$0x1]
    %v966 = vperm.slane %v964, 0
    %v984 = vunpack.c.l.b16 %v948
    %v985 = vunpack.c.l.b16 %v949
    %v986 = vunpack.c.l.b16 %v950
    %v987 = vunpack.c.l.b16 %v951
    %v988 = vunpack.c.l.b16 %v952
    %v989 = vunpack.c.l.b16 %v953
    %v990 = vunpack.c.l.b16 %v954
    %v991 = vunpack.c.l.b16 %v955
    %v992 = vunpack.c.l.b16 %v956
    %v993 = vunpack.c.l.b16 %v957
    %v994 = vunpack.c.l.b16 %v958
    %v995 = vunpack.c.l.b16 %v959
    %v996 = vunpack.c.l.b16 %v960
    %v997 = vunpack.c.l.b16 %v961
    %v998 = vunpack.c.l.b16 %v962
    %v999 = vunpack.c.l.b16 %v963
    %v1000 = vpack.c.b16 %v985, %v984
    %v1001 = vpack.c.b16 %v987, %v986
    %v1002 = vpack.c.b16 %v989, %v988
    %v1003 = vpack.c.b16 %v991, %v990
    %v1004 = vpack.c.b16 %v993, %v992
    %v1005 = vpack.c.b16 %v995, %v994
    %v1006 = vpack.c.b16 %v997, %v996
    %v1007 = vpack.c.b16 %v999, %v998
    %1016 = vmatpush.bf16.msra.mxu0 %v1007
    %1017 = vmatpush.bf16.msra.mxu0 %v1006
    %1018 = vmatpush.bf16.msra.mxu0 %v1005
    %1019 = vmatpush.bf16.msra.mxu0 %v1004
    %1020 = vmatpush.bf16.msra.mxu0 %v1003
    %1021 = vmatpush.bf16.msra.mxu0 %v1002
    %1022 = vmatpush.bf16.msra.mxu0 %v1001
    %1023 = vmatpush.bf16.msra.mxu0 %v1000
    %1024 = vmatmul.bf16.gmra.mxu0 %v947
    %v1025 = vpop.f32.mrf.mxu0
    %v1026 = vadd.f32 %v966, %v1025
    %v1027 = vpop.f32.mrf.mxu0
    %1028 = vdwg.mxu0
    %1029 = vst [vmem:[%s5] sm:$0xff] %v1026
  $region29: #{rnn_classifier_forward.1} parent=0 // pred_fallthru
    _
  // Predicated region
  $region30: #{rnn_classifier_forward.1} parent=0 // pred_check
    _
  $region31: #{rnn_classifier_forward.1} parent=0 // pred_check_branch
    %1031 = sbr.rel (0) target = $region33
  $region32: #{rnn_classifier_forward.1} parent=0 // pred_region
    _
  $region33: #{rnn_classifier_forward.1} parent=0 // pred_fallthru
    _
  // Predicated region
  $region34: #{rnn_classifier_forward.1} parent=0 // pred_check
    _
  $region35: #{rnn_classifier_forward.1} parent=0 // pred_check_branch
    %1033 = sbr.rel (0) target = $region37
  $region36: #{rnn_classifier_forward.1} parent=0 // pred_region
    _
  $region37: #{rnn_classifier_forward.1} parent=0 // pred_fallthru
    _

</llo_original>
